<compile_context>
chip_gen: v5e
topology: v5e:2x2
jax: 0.10.0
libtpu: 0.0.40
codegen_flags: <defaults>
</compile_context>

<pallas_src>
import functools

import numpy as np
import jax
import jax.numpy as jnp
from jax.experimental import pallas as pl
from jax.experimental.pallas import tpu as pltpu


HEAD_LANES = 128  # lane-dense fused mu|var head output width


def _qhead_kernel(x_ref, w1_ref, gb1_hbm, w2_hbm, gb2_hbm, wh_hbm, bh_hbm,
                  out_ref,
                  acc_ref, gb1_v, w2_v, gb2_v, wh_v, bh_v, sem, *, z_dim):
    k = pl.program_id(0)

    def const_copies():
        # Single-buffered constant operands: one HBM->VMEM DMA each, overlapped
        # with the (dominant) w1 stream.
        return (
            pltpu.make_async_copy(gb1_hbm, gb1_v, sem.at[0]),
            pltpu.make_async_copy(w2_hbm, w2_v, sem.at[1]),
            pltpu.make_async_copy(gb2_hbm, gb2_v, sem.at[2]),
            pltpu.make_async_copy(wh_hbm, wh_v, sem.at[3]),
            pltpu.make_async_copy(bh_hbm, bh_v, sem.at[4]),
        )

    @pl.when(k == 0)
    def _init():
        acc_ref[...] = jnp.zeros_like(acc_ref)
        for cp in const_copies():
            cp.start()

    # conv1 partial GEMM over this K tile: in-kernel bf16 cast of x, f32 MXU accumulate.
    acc_ref[...] += jnp.dot(x_ref[...].astype(jnp.bfloat16), w1_ref[...],
                            preferred_element_type=jnp.float32)

    @pl.when(k == pl.num_programs(0) - 1)
    def _finalize():
        for cp in const_copies():
            cp.wait()

        eps = jnp.float32(1e-5)

        def bn_lrelu(h, gb):
            # Train-mode BatchNorm (biased batch var, two-pass form as in PyTorch)
            # fused with leaky_relu(0.1).  All stats / scale-shift math in f32.
            m = jnp.mean(h, axis=0, keepdims=True)
            d = h - m
            v = jnp.mean(d * d, axis=0, keepdims=True)
            g = gb[0:1, :]
            b = gb[1:2, :]
            y = d * (g * jax.lax.rsqrt(v + eps)) + b
            return jnp.where(y > 0, y, jnp.float32(0.1) * y)

        h1 = bn_lrelu(acc_ref[...], gb1_v[...])                       # (N, 512) f32

        h2 = jnp.dot(h1.astype(jnp.bfloat16), w2_v[...],
                     preferred_element_type=jnp.float32)              # (N, 256) f32
        h2 = bn_lrelu(h2, gb2_v[...])

        # Fused mu|var head kept in f32 (tiny GEMM; avoids bf16 error amplified by
        # exp in the variance).  exp applied only to lanes >= z_dim; padding lanes
        # are sliced away in the wrapper.
        h3 = jnp.dot(h2, wh_v[...], preferred_element_type=jnp.float32) + bh_v[...]
        lane = jax.lax.broadcasted_iota(jnp.int32, h3.shape, 1)
        out_ref[...] = jnp.where(lane >= z_dim, jnp.exp(h3), h3)


def prepare_params(params, c_in, h, w, z_dim):
    """One-time (per model) weight packing: hoists reshape/transpose/fusion out of the
    per-call path.  Large GEMM weights (w1, w2) go to bf16; the tiny fused mu|var
    head weight/bias stay f32."""
    if 2 * z_dim > HEAD_LANES:
        raise ValueError(f"z_dim={z_dim} too large for fused {HEAD_LANES}-lane head")
    chw = c_in * h * w
    w1 = jnp.asarray(params["w1"], jnp.float32).reshape(512, chw).T.astype(jnp.bfloat16)
    w2 = jnp.asarray(params["w2"], jnp.float32).reshape(256, 512).T.astype(jnp.bfloat16)

    wmu = jnp.asarray(params["w_mu"], jnp.float32).reshape(z_dim, 256).T    # (256, z)
    wvar = jnp.asarray(params["w_var"], jnp.float32).reshape(z_dim, 256).T  # (256, z)
    wh = jnp.zeros((256, HEAD_LANES), jnp.float32)
    wh = wh.at[:, :z_dim].set(wmu).at[:, z_dim:2 * z_dim].set(wvar)         # f32

    bh = jnp.zeros((1, HEAD_LANES), jnp.float32)
    bh = bh.at[0, :z_dim].set(params["b_mu"]).at[0, z_dim:2 * z_dim].set(params["b_var"])

    gb1 = jnp.stack([params["gamma1"], params["beta1"]], axis=0)  # (2, 512) f32
    gb2 = jnp.stack([params["gamma2"], params["beta2"]], axis=0)  # (2, 256) f32
    return {"w1": w1, "w2": w2, "wh": wh, "bh": bh, "gb1": gb1, "gb2": gb2,
            "z_dim": z_dim}


def _pick_tk(chw, max_tile_bytes=8 * 1024 * 1024):
    """K tile for the (tk, 512) bf16 w1 stream.

    Prefer a single K step (tk == chw) whenever one tile stays under
    max_tile_bytes -- double-buffered that is <= ~16 MiB, safely inside the
    32 MiB scoped-VMEM budget on v5e/v6e/v7x.  Otherwise use the largest
    lane-aligned (multiple-of-128) divisor of chw under the cap."""
    cap_rows = max(128, max_tile_bytes // (512 * 2))  # bf16 w1 rows per tile
    if chw <= cap_rows:
        return chw
    best = 0
    for t in range(128, cap_rows + 1, 128):
        if chw % t == 0:
            best = t
    return best if best else chw


def bigan_qhead_discriminator(x_nchw, prep):
    """Pallas implementation of BiGANQHeadDiscriminator.forward (training-mode BN)."""
    N, C, H, W = x_nchw.shape
    chw = C * H * W
    z = prep["z_dim"]

    x = x_nchw.reshape(N, chw)              # contiguous view; stays f32 (cast in-kernel)
    tk = _pick_tk(chw)
    kt = chw // tk

    kernel = functools.partial(_qhead_kernel, z_dim=z)

    # TODO(synk): a v7x-only 2-TensorCore split of conv1's 512 output channels
    # (halving the w1 stream) is possible via core_map + CMEM exchange for very
    # large chw; not implemented here.
    out = pl.pallas_call(
        kernel,
        out_shape=jax.ShapeDtypeStruct((N, HEAD_LANES), jnp.float32),
        grid_spec=pltpu.PrefetchScalarGridSpec(
            num_scalar_prefetch=0,
            grid=(kt,),
            in_specs=[
                pl.BlockSpec((N, tk), lambda k: (0, k)),      # x K-tile (f32)
                pl.BlockSpec((tk, 512), lambda k: (k, 0)),    # w1 K-tile (bf16)
                pl.BlockSpec(memory_space=pl.ANY),            # gamma1|beta1 (HBM)
                pl.BlockSpec(memory_space=pl.ANY),            # w2 (HBM, bf16)
                pl.BlockSpec(memory_space=pl.ANY),            # gamma2|beta2 (HBM)
                pl.BlockSpec(memory_space=pl.ANY),            # fused mu|var W (HBM)
                pl.BlockSpec(memory_space=pl.ANY),            # fused mu|var bias (HBM)
            ],
            out_specs=pl.BlockSpec((N, HEAD_LANES), lambda k: (0, 0)),
            scratch_shapes=[
                pltpu.VMEM((N, 512), jnp.float32),            # conv1 f32 accumulator
                pltpu.VMEM((2, 512), jnp.float32),            # gb1 (single-buffered)
                pltpu.VMEM((512, 256), jnp.bfloat16),         # w2  (single-buffered)
                pltpu.VMEM((2, 256), jnp.float32),            # gb2 (single-buffered)
                pltpu.VMEM((256, HEAD_LANES), jnp.float32),   # fused head W (f32)
                pltpu.VMEM((1, HEAD_LANES), jnp.float32),     # fused head bias (f32)
                pltpu.SemaphoreType.DMA((5,)),                # one sem per constant DMA
            ],
        ),
        compiler_params=pltpu.CompilerParams(
            dimension_semantics=("arbitrary",),    # reduction axis (accumulator carried)
            vmem_limit_bytes=32 * 1024 * 1024,     # v7x scoped-VMEM-safe budget
        ),
    )(x, prep["w1"], prep["gb1"], prep["w2"], prep["gb2"], prep["wh"], prep["bh"])

    mu = out[:, :z]
    var = out[:, z:2 * z]
    # torch .squeeze(): drop the 1x1 spatial dims (and z dim if z_dim == 1)
    return jnp.squeeze(mu), jnp.squeeze(var)


def _reference(x_nchw, params):
    """Pure-JAX f32 reference of the same forward pass (for verification)."""
    N, C, H, W = x_nchw.shape
    eps = 1e-5
    x = x_nchw.reshape(N, C * H * W).astype(jnp.float32)
    h1 = x @ params["w1"].reshape(512, -1).T
    m1 = h1.mean(0); v1 = ((h1 - m1) ** 2).mean(0)
    h1 = (h1 - m1) / jnp.sqrt(v1 + eps) * params["gamma1"] + params["beta1"]
    h1 = jnp.where(h1 > 0, h1, 0.1 * h1)
    h2 = h1 @ params["w2"].reshape(256, 512).T
    m2 = h2.mean(0); v2 = ((h2 - m2) ** 2).mean(0)
    h2 = (h2 - m2) / jnp.sqrt(v2 + eps) * params["gamma2"] + params["beta2"]
    h2 = jnp.where(h2 > 0, h2, 0.1 * h2)
    mu = h2 @ params["w_mu"].reshape(-1, 256).T + params["b_mu"]
    var = jnp.exp(h2 @ params["w_var"].reshape(-1, 256).T + params["b_var"])
    return jnp.squeeze(mu), jnp.squeeze(var)


if __name__ == "__main__":
    # Module-consistent small shapes: ndf=8 -> conv1 in-channels = ndf*8 = 64,
    # size=4 (conv1 kernel == input spatial extent), z_dim=4, batch N=8.
    N, ndf, size, z_dim = 8, 8, 4, 4
    c_in = ndf * 8

    key = jax.random.PRNGKey(0)
    k = jax.random.split(key, 6)
    params = {
        # conv1: (512, ndf*8, size, size), bias=False
        "w1": 0.05 * jax.random.normal(k[0], (512, c_in, size, size), jnp.float32),
        # BatchNorm2d(512): PyTorch default init (gamma=1, beta=0)
        "gamma1": jnp.ones((512,), jnp.float32),
        "beta1": jnp.zeros((512,), jnp.float32),
        # conv2: (256, 512, 1, 1), bias=False
        "w2": 0.05 * jax.random.normal(k[1], (256, 512, 1, 1), jnp.float32),
        "gamma2": jnp.ones((256,), jnp.float32),
        "beta2": jnp.zeros((256,), jnp.float32),
        # conv_mu / conv_var: (z_dim, 256, 1, 1) with bias
        "w_mu": 0.05 * jax.random.normal(k[2], (z_dim, 256, 1, 1), jnp.float32),
        "b_mu": 0.05 * jax.random.normal(k[3], (z_dim,), jnp.float32),
        "w_var": 0.05 * jax.random.normal(k[4], (z_dim, 256, 1, 1), jnp.float32),
        "b_var": 0.05 * jax.random.normal(k[5], (z_dim,), jnp.float32),
    }

    # TODO(synk): BatchNorm running-mean/var buffer updates (a training-time side
    # effect of the PyTorch module) are not emitted; only the forward outputs are.
    prep = prepare_params(params, c_in, size, size, z_dim)

    x = jax.random.normal(jax.random.PRNGKey(42), (N, c_in, size, size), jnp.float32)

    mu, var = bigan_qhead_discriminator(x, prep)
    mu, var = jax.block_until_ready(mu), jax.block_until_ready(var)

    mu_ref, var_ref = _reference(x, params)
    # bf16 conv1/conv2 GEMM operands (f32 accumulation) -> loosened tolerance vs f32 ref.
    np.testing.assert_allclose(np.asarray(mu), np.asarray(mu_ref), rtol=2e-2, atol=2e-2)
    np.testing.assert_allclose(np.asarray(var), np.asarray(var_ref), rtol=2e-2, atol=2e-2)

    print("KERNEL_OK")
</pallas_src>

<mosaic_0001>
module attributes {stable_mosaic.version = 11 : i64} {
  func.func @_qhead_kernel(%arg0: i32, %arg1: memref<8x1024xf32, #tpu.memory_space<vmem>>, %arg2: memref<1024x512xbf16, #tpu.memory_space<vmem>>, %arg3: memref<2x512xf32, #tpu.memory_space<any>>, %arg4: memref<512x256xbf16, #tpu.memory_space<any>>, %arg5: memref<2x256xf32, #tpu.memory_space<any>>, %arg6: memref<256x128xf32, #tpu.memory_space<any>>, %arg7: memref<1x128xf32, #tpu.memory_space<any>>, %arg8: memref<8x128xf32, #tpu.memory_space<vmem>>, %arg9: memref<8x512xf32, #tpu.memory_space<vmem>>, %arg10: memref<2x512xf32, #tpu.memory_space<vmem>>, %arg11: memref<512x256xbf16, #tpu.memory_space<vmem>>, %arg12: memref<2x256xf32, #tpu.memory_space<vmem>>, %arg13: memref<256x128xf32, #tpu.memory_space<vmem>>, %arg14: memref<1x128xf32, #tpu.memory_space<vmem>>, %arg15: memref<5x!tpu.dma_semaphore, #tpu.memory_space<semaphore_mem>>) attributes {dimension_semantics = [#tpu.dimension_semantics<arbitrary>], iteration_bounds = array<i64: 1>, scalar_prefetch = 0 : i64, scratch_operands = 7 : i64, tpu.core_type = #tpu.core_type<tc>, window_params = [{transform_indices = @transform_0, window_bounds = array<i64: 8, 1024>}, {transform_indices = @transform_1, window_bounds = array<i64: 1024, 512>}, {}, {}, {}, {}, {}, {pipeline_mode = #tpu.pipeline_mode<synchronous>, transform_indices = @transform_7, window_bounds = array<i64: 8, 128>}]} {
    %c0_i32 = arith.constant 0 : i32
    %0 = arith.cmpi eq, %arg0, %c0_i32 : i32
    %1 = arith.extui %0 : i1 to i32
    %c0_i32_0 = arith.constant 0 : i32
    %2 = arith.cmpi ne, %1, %c0_i32_0 : i32
    scf.if %2 {
      %cst_10 = arith.constant 0.000000e+00 : f32
      %13 = vector.broadcast %cst_10 : f32 to vector<8x512xf32>
      %c0_11 = arith.constant 0 : index
      %c0_12 = arith.constant 0 : index
      %14 = vector.load %arg9[%c0_11, %c0_12] : memref<8x512xf32, #tpu.memory_space<vmem>>, vector<8x512xf32>
      tpu.vector_store %arg9[%c0_11, %c0_12], %13 {strides = array<i32>} : memref<8x512xf32, #tpu.memory_space<vmem>>, vector<8x512xf32>,
      %c0_i32_13 = arith.constant 0 : i32
      %15 = tpu.memref_slice %arg15[%c0_i32_13] : memref<5x!tpu.dma_semaphore, #tpu.memory_space<semaphore_mem>> -> memref<1x!tpu.dma_semaphore, #tpu.memory_space<semaphore_mem>>
      %16 = tpu.memref_squeeze %15 : memref<1x!tpu.dma_semaphore, #tpu.memory_space<semaphore_mem>> -> memref<!tpu.dma_semaphore, #tpu.memory_space<semaphore_mem>>
      tpu.enqueue_dma source(%arg3 : memref<2x512xf32, #tpu.memory_space<any>>) target(%arg10 : memref<2x512xf32, #tpu.memory_space<vmem>>) target_semaphore(%16 : memref<!tpu.dma_semaphore, #tpu.memory_space<semaphore_mem>>)
      %c1_i32 = arith.constant 1 : i32
      %17 = tpu.memref_slice %arg15[%c1_i32] : memref<5x!tpu.dma_semaphore, #tpu.memory_space<semaphore_mem>> -> memref<1x!tpu.dma_semaphore, #tpu.memory_space<semaphore_mem>>
      %18 = tpu.memref_squeeze %17 : memref<1x!tpu.dma_semaphore, #tpu.memory_space<semaphore_mem>> -> memref<!tpu.dma_semaphore, #tpu.memory_space<semaphore_mem>>
      tpu.enqueue_dma source(%arg4 : memref<512x256xbf16, #tpu.memory_space<any>>) target(%arg11 : memref<512x256xbf16, #tpu.memory_space<vmem>>) target_semaphore(%18 : memref<!tpu.dma_semaphore, #tpu.memory_space<semaphore_mem>>)
      %c2_i32 = arith.constant 2 : i32
      %19 = tpu.memref_slice %arg15[%c2_i32] : memref<5x!tpu.dma_semaphore, #tpu.memory_space<semaphore_mem>> -> memref<1x!tpu.dma_semaphore, #tpu.memory_space<semaphore_mem>>
      %20 = tpu.memref_squeeze %19 : memref<1x!tpu.dma_semaphore, #tpu.memory_space<semaphore_mem>> -> memref<!tpu.dma_semaphore, #tpu.memory_space<semaphore_mem>>
      tpu.enqueue_dma source(%arg5 : memref<2x256xf32, #tpu.memory_space<any>>) target(%arg12 : memref<2x256xf32, #tpu.memory_space<vmem>>) target_semaphore(%20 : memref<!tpu.dma_semaphore, #tpu.memory_space<semaphore_mem>>)
      %c3_i32 = arith.constant 3 : i32
      %21 = tpu.memref_slice %arg15[%c3_i32] : memref<5x!tpu.dma_semaphore, #tpu.memory_space<semaphore_mem>> -> memref<1x!tpu.dma_semaphore, #tpu.memory_space<semaphore_mem>>
      %22 = tpu.memref_squeeze %21 : memref<1x!tpu.dma_semaphore, #tpu.memory_space<semaphore_mem>> -> memref<!tpu.dma_semaphore, #tpu.memory_space<semaphore_mem>>
      tpu.enqueue_dma source(%arg6 : memref<256x128xf32, #tpu.memory_space<any>>) target(%arg13 : memref<256x128xf32, #tpu.memory_space<vmem>>) target_semaphore(%22 : memref<!tpu.dma_semaphore, #tpu.memory_space<semaphore_mem>>)
      %c4_i32 = arith.constant 4 : i32
      %23 = tpu.memref_slice %arg15[%c4_i32] : memref<5x!tpu.dma_semaphore, #tpu.memory_space<semaphore_mem>> -> memref<1x!tpu.dma_semaphore, #tpu.memory_space<semaphore_mem>>
      %24 = tpu.memref_squeeze %23 : memref<1x!tpu.dma_semaphore, #tpu.memory_space<semaphore_mem>> -> memref<!tpu.dma_semaphore, #tpu.memory_space<semaphore_mem>>
      tpu.enqueue_dma source(%arg7 : memref<1x128xf32, #tpu.memory_space<any>>) target(%arg14 : memref<1x128xf32, #tpu.memory_space<vmem>>) target_semaphore(%24 : memref<!tpu.dma_semaphore, #tpu.memory_space<semaphore_mem>>)
    } else {
    }
    %c0 = arith.constant 0 : index
    %c0_1 = arith.constant 0 : index
    %3 = vector.load %arg9[%c0, %c0_1] : memref<8x512xf32, #tpu.memory_space<vmem>>, vector<8x512xf32>
    %c0_2 = arith.constant 0 : index
    %c0_3 = arith.constant 0 : index
    %4 = vector.load %arg1[%c0_2, %c0_3] : memref<8x1024xf32, #tpu.memory_space<vmem>>, vector<8x1024xf32>
    %5 = arith.truncf %4 : vector<8x1024xf32> to vector<8x1024xbf16>
    %c0_4 = arith.constant 0 : index
    %c0_5 = arith.constant 0 : index
    %6 = vector.load %arg2[%c0_4, %c0_5] : memref<1024x512xbf16, #tpu.memory_space<vmem>>, vector<1024x512xbf16>
    %cst = arith.constant dense<0.000000e+00> : vector<8x512xf32>
    %7 = tpu.matmul %5, %6, %cst {dimension_numbers = #tpu.dot_dimension_numbers<[1], [0], [0], [1], [0, 0, 1, 1], [], []>} : vector<8x1024xbf16>, vector<1024x512xbf16>, vector<8x512xf32> -> vector<8x512xf32>
    %8 = arith.addf %3, %7 : vector<8x512xf32>
    %c0_6 = arith.constant 0 : index
    %c0_7 = arith.constant 0 : index
    %9 = vector.load %arg9[%c0_6, %c0_7] : memref<8x512xf32, #tpu.memory_space<vmem>>, vector<8x512xf32>
    tpu.vector_store %arg9[%c0_6, %c0_7], %8 {strides = array<i32>} : memref<8x512xf32, #tpu.memory_space<vmem>>, vector<8x512xf32>,
    %c0_i32_8 = arith.constant 0 : i32
    %10 = arith.cmpi eq, %arg0, %c0_i32_8 : i32
    %11 = arith.extui %10 : i1 to i32
    %c0_i32_9 = arith.constant 0 : i32
    %12 = arith.cmpi ne, %11, %c0_i32_9 : i32
    scf.if %12 {
      %c0_i32_10 = arith.constant 0 : i32
      %13 = tpu.memref_slice %arg15[%c0_i32_10] : memref<5x!tpu.dma_semaphore, #tpu.memory_space<semaphore_mem>> -> memref<1x!tpu.dma_semaphore, #tpu.memory_space<semaphore_mem>>
      %14 = tpu.memref_squeeze %13 : memref<1x!tpu.dma_semaphore, #tpu.memory_space<semaphore_mem>> -> memref<!tpu.dma_semaphore, #tpu.memory_space<semaphore_mem>>
      tpu.wait_dma2 semaphore(%14 : memref<!tpu.dma_semaphore, #tpu.memory_space<semaphore_mem>>) src(%arg3 : memref<2x512xf32, #tpu.memory_space<any>>) dst(%arg10 : memref<2x512xf32, #tpu.memory_space<vmem>>)
      %c1_i32 = arith.constant 1 : i32
      %15 = tpu.memref_slice %arg15[%c1_i32] : memref<5x!tpu.dma_semaphore, #tpu.memory_space<semaphore_mem>> -> memref<1x!tpu.dma_semaphore, #tpu.memory_space<semaphore_mem>>
      %16 = tpu.memref_squeeze %15 : memref<1x!tpu.dma_semaphore, #tpu.memory_space<semaphore_mem>> -> memref<!tpu.dma_semaphore, #tpu.memory_space<semaphore_mem>>
      tpu.wait_dma2 semaphore(%16 : memref<!tpu.dma_semaphore, #tpu.memory_space<semaphore_mem>>) src(%arg4 : memref<512x256xbf16, #tpu.memory_space<any>>) dst(%arg11 : memref<512x256xbf16, #tpu.memory_space<vmem>>)
      %c2_i32 = arith.constant 2 : i32
      %17 = tpu.memref_slice %arg15[%c2_i32] : memref<5x!tpu.dma_semaphore, #tpu.memory_space<semaphore_mem>> -> memref<1x!tpu.dma_semaphore, #tpu.memory_space<semaphore_mem>>
      %18 = tpu.memref_squeeze %17 : memref<1x!tpu.dma_semaphore, #tpu.memory_space<semaphore_mem>> -> memref<!tpu.dma_semaphore, #tpu.memory_space<semaphore_mem>>
      tpu.wait_dma2 semaphore(%18 : memref<!tpu.dma_semaphore, #tpu.memory_space<semaphore_mem>>) src(%arg5 : memref<2x256xf32, #tpu.memory_space<any>>) dst(%arg12 : memref<2x256xf32, #tpu.memory_space<vmem>>)
      %c3_i32 = arith.constant 3 : i32
      %19 = tpu.memref_slice %arg15[%c3_i32] : memref<5x!tpu.dma_semaphore, #tpu.memory_space<semaphore_mem>> -> memref<1x!tpu.dma_semaphore, #tpu.memory_space<semaphore_mem>>
      %20 = tpu.memref_squeeze %19 : memref<1x!tpu.dma_semaphore, #tpu.memory_space<semaphore_mem>> -> memref<!tpu.dma_semaphore, #tpu.memory_space<semaphore_mem>>
      tpu.wait_dma2 semaphore(%20 : memref<!tpu.dma_semaphore, #tpu.memory_space<semaphore_mem>>) src(%arg6 : memref<256x128xf32, #tpu.memory_space<any>>) dst(%arg13 : memref<256x128xf32, #tpu.memory_space<vmem>>)
      %c4_i32 = arith.constant 4 : i32
      %21 = tpu.memref_slice %arg15[%c4_i32] : memref<5x!tpu.dma_semaphore, #tpu.memory_space<semaphore_mem>> -> memref<1x!tpu.dma_semaphore, #tpu.memory_space<semaphore_mem>>
      %22 = tpu.memref_squeeze %21 : memref<1x!tpu.dma_semaphore, #tpu.memory_space<semaphore_mem>> -> memref<!tpu.dma_semaphore, #tpu.memory_space<semaphore_mem>>
      tpu.wait_dma2 semaphore(%22 : memref<!tpu.dma_semaphore, #tpu.memory_space<semaphore_mem>>) src(%arg7 : memref<1x128xf32, #tpu.memory_space<any>>) dst(%arg14 : memref<1x128xf32, #tpu.memory_space<vmem>>)
      %c0_11 = arith.constant 0 : index
      %c0_12 = arith.constant 0 : index
      %23 = vector.load %arg9[%c0_11, %c0_12] : memref<8x512xf32, #tpu.memory_space<vmem>>, vector<8x512xf32>
      %c0_13 = arith.constant 0 : index
      %c0_14 = arith.constant 0 : index
      %24 = vector.load %arg10[%c0_13, %c0_14] : memref<2x512xf32, #tpu.memory_space<vmem>>, vector<2x512xf32>
      %cst_15 = arith.constant dense<0.000000e+00> : vector<512xf32>
      %25 = vector.multi_reduction <add>, %23, %cst_15 [0] : vector<8x512xf32> to vector<512xf32>
      %26 = vector.shape_cast %25 : vector<512xf32> to vector<1x512xf32>
      %cst_16 = arith.constant 8.000000e+00 : f32
      %27 = vector.broadcast %cst_16 : f32 to vector<1x512xf32>
      %28 = arith.divf %26, %27 : vector<1x512xf32>
      %29 = vector.broadcast %28 : vector<1x512xf32> to vector<8x512xf32>
      %30 = arith.subf %23, %29 : vector<8x512xf32>
      %31 = arith.mulf %30, %30 : vector<8x512xf32>
      %cst_17 = arith.constant dense<0.000000e+00> : vector<512xf32>
      %32 = vector.multi_reduction <add>, %31, %cst_17 [0] : vector<8x512xf32> to vector<512xf32>
      %33 = vector.shape_cast %32 : vector<512xf32> to vector<1x512xf32>
      %cst_18 = arith.constant 8.000000e+00 : f32
      %34 = vector.broadcast %cst_18 : f32 to vector<1x512xf32>
      %35 = arith.divf %33, %34 : vector<1x512xf32>
      %36 = vector.extract_strided_slice %24 {offsets = [0, 0], sizes = [1, 512], strides = [1, 1]} : vector<2x512xf32> to vector<1x512xf32>
      %37 = vector.extract_strided_slice %24 {offsets = [1, 0], sizes = [1, 512], strides = [1, 1]} : vector<2x512xf32> to vector<1x512xf32>
      %cst_19 = arith.constant 9.99999974E-6 : f32
      %38 = vector.broadcast %cst_19 : f32 to vector<1x512xf32>
      %39 = arith.addf %35, %38 : vector<1x512xf32>
      %40 = math.rsqrt %39 : vector<1x512xf32>
      %41 = arith.mulf %36, %40 : vector<1x512xf32>
      %42 = vector.broadcast %41 : vector<1x512xf32> to vector<8x512xf32>
      %43 = arith.mulf %30, %42 : vector<8x512xf32>
      %44 = vector.broadcast %37 : vector<1x512xf32> to vector<8x512xf32>
      %45 = arith.addf %43, %44 : vector<8x512xf32>
      %cst_20 = arith.constant 0.000000e+00 : f32
      %46 = vector.broadcast %cst_20 : f32 to vector<8x512xf32>
      %47 = arith.cmpf ogt, %45, %46 : vector<8x512xf32>
      %cst_21 = arith.constant 1.000000e-01 : f32
      %48 = vector.broadcast %cst_21 : f32 to vector<8x512xf32>
      %49 = arith.mulf %48, %45 : vector<8x512xf32>
      %50 = arith.select %47, %45, %49 : vector<8x512xi1>, vector<8x512xf32>
      %51 = arith.truncf %50 : vector<8x512xf32> to vector<8x512xbf16>
      %c0_22 = arith.constant 0 : index
      %c0_23 = arith.constant 0 : index
      %52 = vector.load %arg11[%c0_22, %c0_23] : memref<512x256xbf16, #tpu.memory_space<vmem>>, vector<512x256xbf16>
      %cst_24 = arith.constant dense<0.000000e+00> : vector<8x256xf32>
      %53 = tpu.matmul %51, %52, %cst_24 {dimension_numbers = #tpu.dot_dimension_numbers<[1], [0], [0], [1], [0, 0, 1, 1], [], []>} : vector<8x512xbf16>, vector<512x256xbf16>, vector<8x256xf32> -> vector<8x256xf32>
      %c0_25 = arith.constant 0 : index
      %c0_26 = arith.constant 0 : index
      %54 = vector.load %arg12[%c0_25, %c0_26] : memref<2x256xf32, #tpu.memory_space<vmem>>, vector<2x256xf32>
      %cst_27 = arith.constant dense<0.000000e+00> : vector<256xf32>
      %55 = vector.multi_reduction <add>, %53, %cst_27 [0] : vector<8x256xf32> to vector<256xf32>
      %56 = vector.shape_cast %55 : vector<256xf32> to vector<1x256xf32>
      %cst_28 = arith.constant 8.000000e+00 : f32
      %57 = vector.broadcast %cst_28 : f32 to vector<1x256xf32>
      %58 = arith.divf %56, %57 : vector<1x256xf32>
      %59 = vector.broadcast %58 : vector<1x256xf32> to vector<8x256xf32>
      %60 = arith.subf %53, %59 : vector<8x256xf32>
      %61 = arith.mulf %60, %60 : vector<8x256xf32>
      %cst_29 = arith.constant dense<0.000000e+00> : vector<256xf32>
      %62 = vector.multi_reduction <add>, %61, %cst_29 [0] : vector<8x256xf32> to vector<256xf32>
      %63 = vector.shape_cast %62 : vector<256xf32> to vector<1x256xf32>
      %cst_30 = arith.constant 8.000000e+00 : f32
      %64 = vector.broadcast %cst_30 : f32 to vector<1x256xf32>
      %65 = arith.divf %63, %64 : vector<1x256xf32>
      %66 = vector.extract_strided_slice %54 {offsets = [0, 0], sizes = [1, 256], strides = [1, 1]} : vector<2x256xf32> to vector<1x256xf32>
      %67 = vector.extract_strided_slice %54 {offsets = [1, 0], sizes = [1, 256], strides = [1, 1]} : vector<2x256xf32> to vector<1x256xf32>
      %cst_31 = arith.constant 9.99999974E-6 : f32
      %68 = vector.broadcast %cst_31 : f32 to vector<1x256xf32>
      %69 = arith.addf %65, %68 : vector<1x256xf32>
      %70 = math.rsqrt %69 : vector<1x256xf32>
      %71 = arith.mulf %66, %70 : vector<1x256xf32>
      %72 = vector.broadcast %71 : vector<1x256xf32> to vector<8x256xf32>
      %73 = arith.mulf %60, %72 : vector<8x256xf32>
      %74 = vector.broadcast %67 : vector<1x256xf32> to vector<8x256xf32>
      %75 = arith.addf %73, %74 : vector<8x256xf32>
      %cst_32 = arith.constant 0.000000e+00 : f32
      %76 = vector.broadcast %cst_32 : f32 to vector<8x256xf32>
      %77 = arith.cmpf ogt, %75, %76 : vector<8x256xf32>
      %cst_33 = arith.constant 1.000000e-01 : f32
      %78 = vector.broadcast %cst_33 : f32 to vector<8x256xf32>
      %79 = arith.mulf %78, %75 : vector<8x256xf32>
      %80 = arith.select %77, %75, %79 : vector<8x256xi1>, vector<8x256xf32>
      %c0_34 = arith.constant 0 : index
      %c0_35 = arith.constant 0 : index
      %81 = vector.load %arg13[%c0_34, %c0_35] : memref<256x128xf32, #tpu.memory_space<vmem>>, vector<256x128xf32>
      %cst_36 = arith.constant dense<0.000000e+00> : vector<8x128xf32>
      %82 = tpu.matmul %80, %81, %cst_36 {dimension_numbers = #tpu.dot_dimension_numbers<[1], [0], [0], [1], [0, 0, 1, 1], [], []>} : vector<8x256xf32>, vector<256x128xf32>, vector<8x128xf32> -> vector<8x128xf32>
      %c0_37 = arith.constant 0 : index
      %c0_38 = arith.constant 0 : index
      %83 = vector.load %arg14[%c0_37, %c0_38] : memref<1x128xf32, #tpu.memory_space<vmem>>, vector<1x128xf32>
      %84 = vector.broadcast %83 : vector<1x128xf32> to vector<8x128xf32>
      %85 = arith.addf %82, %84 : vector<8x128xf32>
      %86 = tpu.iota {dimensions = array<i32: 1>} : vector<8x128xi32>
      %c4_i32_39 = arith.constant 4 : i32
      %87 = vector.broadcast %c4_i32_39 : i32 to vector<8x128xi32>
      %88 = arith.cmpi sge, %86, %87 : vector<8x128xi32>
      %89 = math.exp %85 : vector<8x128xf32>
      %90 = arith.select %88, %89, %85 : vector<8x128xi1>, vector<8x128xf32>
      %c0_40 = arith.constant 0 : index
      %c0_41 = arith.constant 0 : index
      %91 = vector.load %arg8[%c0_40, %c0_41] : memref<8x128xf32, #tpu.memory_space<vmem>>, vector<8x128xf32>
      tpu.vector_store %arg8[%c0_40, %c0_41], %90 {strides = array<i32>} : memref<8x128xf32, #tpu.memory_space<vmem>>, vector<8x128xf32>,
    } else {
    }
    return
  }
  func.func @transform_0(%arg0: i32) -> (i32, i32) {
    %c0_i32 = arith.constant 0 : i32
    %c0_i32_0 = arith.constant 0 : i32
    return %c0_i32, %arg0 : i32, i32
  }
  func.func @transform_1(%arg0: i32) -> (i32, i32) {
    %c0_i32 = arith.constant 0 : i32
    %c0_i32_0 = arith.constant 0 : i32
    return %arg0, %c0_i32 : i32, i32
  }
  func.func @transform_7(%arg0: i32) -> (i32, i32) {
    %c0_i32 = arith.constant 0 : i32
    %c0_i32_0 = arith.constant 0 : i32
    %c0_i32_1 = arith.constant 0 : i32
    return %c0_i32, %c0_i32_0 : i32, i32
  }
}

</mosaic_0001>

<llo_original>
// kernel: tpu_custom_call.1
$region0: #{tpu_custom_call.1}
  #allocation0 [shape = 'u32[]', space=smem, size = 0x4, offset = 0x4, fixed_abs, tag = 'smem constant byte address 0x4 - core index']
  #allocation1 [shape = 'u32[72,128]{1,0:T(1,128)}', space=vmem, size = 0x9000, scoped, tag = 'internal scratch']
  #allocation2 [shape = 'f32[8,512]{1,0:T(8,128)}', space=vmem, size = 0x4000, scoped, tag = 'scratch operand']
  #allocation3 [shape = 'f32[2,512]{1,0:T(2,128)}', space=vmem, size = 0x1000, scoped, tag = 'scratch operand']
  #allocation4 [shape = 'bf16[512,256]{1,0:T(8,128)(2,1)}', space=vmem, size = 0x40000, scoped, tag = 'scratch operand']
  #allocation5 [shape = 'f32[2,256]{1,0:T(2,128)}', space=vmem, size = 0x800, scoped, tag = 'scratch operand']
  #allocation6 [shape = 'f32[256,128]{1,0:T(8,128)}', space=vmem, size = 0x20000, scoped, tag = 'scratch operand']
  #allocation7 [shape = 'f32[1,128]{1,0:T(1,128)}', space=vmem, size = 0x200, scoped, tag = 'scratch operand']
  #allocation8 [shape = 's32[5]{0}', space=sflag, size = 0x14, scoped, tag = 'scratch operand']
  #allocation15 [shape = 's32[]', space=sflag, size = 0x4, offset = 0, fixed_abs, tag = 'sflag constant byte address 0x0 - dummy sync flag']
  #allocation16 [shape = 's32[]', space=sflag, size = 0x4, offset = 0, fixed_abs, tag = 'sflag constant byte address 0x0 - dummy sync flag']
  #allocation17 [shape = 'u32[]', space=smem, size = 0x4, offset = 0x44, fixed_abs, tag = 'smem constant byte address 0x44 - assertion arg 0']
  #allocation18 [shape = 'u32[]', space=smem, size = 0x4, offset = 0x48, fixed_abs, tag = 'smem constant byte address 0x48 - assertion arg 1']
  #allocation19 [shape = 's32[]', space=sflag, size = 0x4, offset = 0, fixed_abs, tag = 'sflag constant byte address 0x0 - dummy sync flag']
  #allocation20 [shape = 's32[]', space=sflag, size = 0x4, offset = 0, fixed_abs, tag = 'sflag constant byte address 0x0 - dummy sync flag']
  #allocation21 [shape = 's32[]', space=sflag, size = 0x4, offset = 0, fixed_abs, tag = 'sflag constant byte address 0x0 - dummy sync flag']
  #allocation22 [shape = 's32[]', space=sflag, size = 0x4, offset = 0, fixed_abs, tag = 'sflag constant byte address 0x0 - dummy sync flag']
  #allocation23 [shape = 's32[]', space=sflag, size = 0x4, offset = 0, fixed_abs, tag = 'sflag constant byte address 0x0 - dummy sync flag']
  #allocation24 [shape = 's32[]', space=sflag, size = 0x4, offset = 0, fixed_abs, tag = 'sflag constant byte address 0x0 - dummy sync flag']
  #allocation25 [shape = 's32[]', space=sflag, size = 0x4, offset = 0, fixed_abs, tag = 'sflag constant byte address 0x0 - dummy sync flag']
  %s0 = inlined_call_operand.hbm [shape: f32[8,1024], index: 0, kind: input, shape index: {}]
  %s1 = inlined_call_operand.hbm [shape: bf16[1024,512], index: 1, kind: input, shape index: {}]
  %s2 = inlined_call_operand.hbm [shape: f32[2,512], index: 2, kind: input, shape index: {}]
  %s3 = inlined_call_operand.hbm [shape: bf16[512,256], index: 3, kind: input, shape index: {}]
  %s4 = inlined_call_operand.hbm [shape: f32[2,256], index: 4, kind: input, shape index: {}]
  %s5 = inlined_call_operand.hbm [shape: f32[256,128], index: 5, kind: input, shape index: {}]
  %s6 = inlined_call_operand.vmem [shape: f32[1,128], index: 6, kind: input, shape index: {}]
  %s7 = inlined_call_operand.hbm [shape: f32[8,128], index: 7, kind: output, shape index: {}]
  %s8 = sld [smem:[#allocation0]]
  $region80: #{tpu_custom_call.1} parent=0
    _
  %s10 = ssub.s32 1, %s8
  %s11 = scalar_select 0, %s10, %s8
  $region1: #{tpu_custom_call.1} parent=0
    #allocation9 [shape = 'u8[32768]{0}', space=vmem, size = 0x8000, scoped, tag = 'input window, operand 0, single buffered']
    #allocation10 [shape = 's32[1]{0}', space=sflag, size = 0x4, scoped, tag = 'scoped memory for tpu_custom_call.1']
    #allocation11 [shape = 's32[1]{0}', space=sflag, size = 0x4, scoped, tag = 'scoped memory for tpu_custom_call.1']
    #allocation12 [shape = 'u8[1048576]{0}', space=vmem, size = 0x100000, scoped, tag = 'input window, operand 1, single buffered']
    #allocation13 [shape = 's32[1]{0}', space=sflag, size = 0x4, scoped, tag = 'scoped memory for tpu_custom_call.1']
    #allocation14 [shape = 'u8[4096]{0}', space=vmem, size = 0x1000, scoped, tag = 'output window, operand 0, single buffered']
    %12 = vsyncpa [#allocation10], 0
    %13 = vsyncpa [#allocation13], 0
    %14 = vsyncpa [#allocation11], 0
    // Predicated region
    $region2: #{tpu_custom_call.1} parent=1 // pred_check
      _
    $region3: #{tpu_custom_call.1} parent=1 // pred_check_branch
      %16 = sbr.rel (0) target = $region5
    $region4: #{tpu_custom_call.1} parent=1 // pred_region
      %18 = vsyncadd [#allocation10], 0
      %s20 = sshll.u32 %s0, 4
      %s21 = int_to_ptr.hbm [resolvable:$true] %s20
      %s22 = sshll.u32 [#allocation9], 4
      %s23 = int_to_ptr.vmem [resolvable:$true] %s22
      %25 = dma.hbm_to_vmem [thread:$0]  %s21, 1024, %s23, [#allocation10]
    $region5: #{tpu_custom_call.1} parent=1 // pred_fallthru
      _
    // Predicated region
    $region6: #{tpu_custom_call.1} parent=1 // pred_check
      _
    $region7: #{tpu_custom_call.1} parent=1 // pred_check_branch
      %27 = sbr.rel (0) target = $region9
    $region8: #{tpu_custom_call.1} parent=1 // pred_region
      %29 = vsyncadd [#allocation13], 0
      %s30 = sshll.u32 %s1, 4
      %s31 = int_to_ptr.hbm [resolvable:$true] %s30
      %s32 = sshll.u32 [#allocation12], 4
      %s33 = int_to_ptr.vmem [resolvable:$true] %s32
      %38 = dma.hbm_to_vmem [thread:$0]  %s31, 32768, %s33, [#allocation13], 256, 256, 16
    $region9: #{tpu_custom_call.1} parent=1 // pred_fallthru
      _
    // Predicated region
    $region10: #{tpu_custom_call.1} parent=1 // pred_check
      _
    $region11: #{tpu_custom_call.1} parent=1 // pred_check_branch
      %40 = sbr.rel (0) target = $region13
    $region12: #{tpu_custom_call.1} parent=1 // pred_region
      %42 = dma.done [#allocation10], 1024
    $region13: #{tpu_custom_call.1} parent=1 // pred_fallthru
      _
    // Predicated region
    $region14: #{tpu_custom_call.1} parent=1 // pred_check
      _
    $region15: #{tpu_custom_call.1} parent=1 // pred_check_branch
      %44 = sbr.rel (0) target = $region17
    $region16: #{tpu_custom_call.1} parent=1 // pred_region
      %46 = dma.done [#allocation13], 32768
    $region17: #{tpu_custom_call.1} parent=1 // pred_fallthru
      _
    %p47 = scmp.eq.s32.totalorder 0, 0
    // Predicated region
    $region18: #{tpu_custom_call.1} parent=1 // pred_check
      %p48 = pneg %p47
    $region19: #{tpu_custom_call.1} parent=1 // pred_check_branch
      %50 = sbr.rel (%p48) target = $region21
    $region20: #{tpu_custom_call.1} parent=1 // pred_region
      %51 = vst [vmem:[#allocation2] sm:$0xff] 0.0
      %52 = vst [vmem:[#allocation2 + $0x8] sm:$0xff] 0.0
      %53 = vst [vmem:[#allocation2 + $0x10] sm:$0xff] 0.0
      %54 = vst [vmem:[#allocation2 + $0x18] sm:$0xff] 0.0
      // Predicated region
      $region22: #{tpu_custom_call.1} parent=20 // pred_check
        _
      $region23: #{tpu_custom_call.1} parent=20 // pred_check_branch
        %56 = sbr.rel target = $region25
      $region24: #{tpu_custom_call.1} parent=20 // pred_region
        %57 = sst [smem:[#allocation17]] [#allocation16]
        %58 = sst [smem:[#allocation18]] [#allocation15]
      $region25: #{tpu_custom_call.1} parent=20 // pred_fallthru
        _
      %60 = shalt.err (0)
      %s62 = sshll.u32 %s2, 4
      %s63 = int_to_ptr.hbm [resolvable:$true] %s62
      %s64 = sshll.u32 [#allocation3], 4
      %s65 = int_to_ptr.vmem [resolvable:$true] %s64
      %67 = dma.hbm_to_vmem [thread:$0]  %s63, 128, %s65, [#allocation8]
      %s68 = scalar_lea.sflag [#allocation8], 1
      // Predicated region
      $region26: #{tpu_custom_call.1} parent=20 // pred_check
        _
      $region27: #{tpu_custom_call.1} parent=20 // pred_check_branch
        %70 = sbr.rel target = $region29
      $region28: #{tpu_custom_call.1} parent=20 // pred_region
        %71 = sst [smem:[#allocation17]] [#allocation20]
        %72 = sst [smem:[#allocation18]] [#allocation19]
      $region29: #{tpu_custom_call.1} parent=20 // pred_fallthru
        _
      %74 = shalt.err (0)
      %s76 = sshll.u32 %s3, 4
      %s77 = int_to_ptr.hbm [resolvable:$true] %s76
      %s78 = sshll.u32 [#allocation4], 4
      %s79 = int_to_ptr.vmem [resolvable:$true] %s78
      %81 = dma.hbm_to_vmem [thread:$0]  %s77, 8192, %s79, %s68
      %s82 = scalar_lea.sflag [#allocation8], 2
      // Predicated region
      $region30: #{tpu_custom_call.1} parent=20 // pred_check
        _
      $region31: #{tpu_custom_call.1} parent=20 // pred_check_branch
        %84 = sbr.rel target = $region33
      $region32: #{tpu_custom_call.1} parent=20 // pred_region
        %85 = sst [smem:[#allocation17]] [#allocation22]
        %86 = sst [smem:[#allocation18]] [#allocation21]
      $region33: #{tpu_custom_call.1} parent=20 // pred_fallthru
        _
      %88 = shalt.err (0)
      %s90 = sshll.u32 %s4, 4
      %s91 = int_to_ptr.hbm [resolvable:$true] %s90
      %s92 = sshll.u32 [#allocation5], 4
      %s93 = int_to_ptr.vmem [resolvable:$true] %s92
      %95 = dma.hbm_to_vmem [thread:$0]  %s91, 64, %s93, %s82
      %s96 = scalar_lea.sflag [#allocation8], 3
      // Predicated region
      $region34: #{tpu_custom_call.1} parent=20 // pred_check
        _
      $region35: #{tpu_custom_call.1} parent=20 // pred_check_branch
        %98 = sbr.rel target = $region37
      $region36: #{tpu_custom_call.1} parent=20 // pred_region
        %99 = sst [smem:[#allocation17]] [#allocation24]
        %100 = sst [smem:[#allocation18]] [#allocation23]
      $region37: #{tpu_custom_call.1} parent=20 // pred_fallthru
        _
      %102 = shalt.err (0)
      %s104 = sshll.u32 %s5, 4
      %s105 = int_to_ptr.hbm [resolvable:$true] %s104
      %s106 = sshll.u32 [#allocation6], 4
      %s107 = int_to_ptr.vmem [resolvable:$true] %s106
      %109 = dma.hbm_to_vmem [thread:$0]  %s105, 4096, %s107, %s96
      %s110 = scalar_lea.sflag [#allocation8], 4
      // Predicated region
      $region38: #{tpu_custom_call.1} parent=20 // pred_check
        _
      $region39: #{tpu_custom_call.1} parent=20 // pred_check_branch
        %112 = sbr.rel target = $region41
      $region40: #{tpu_custom_call.1} parent=20 // pred_region
        // Predicated region
        $region53: #{tpu_custom_call.1} parent=40 // pred_check
          _
        $region54: #{tpu_custom_call.1} parent=40 // pred_check_branch
          %128 = sbr.rel (0) target = $region56
        $region55: #{tpu_custom_call.1} parent=40 // pred_region
          %s130 = ssub.s32 2, 1
          loop: start=0, step=1, limit=1
          $region57: #{tpu_custom_call.1} parent=55 // loop_pre_header
            _
          $region58: #{tpu_custom_call.1} parent=55 // loop_header
            %s132 = sphi 0, %s136
            %p133 = scmp.ge.s32.totalorder %s132, 1
            %s137 = sphi %s6, %s6
            %s138 = sphi [#allocation7], [#allocation7]
          $region59: #{tpu_custom_call.1} parent=55 // loop_header_branch
            %135 = sbr.rel (%p133) target = $region63
          $region60: #{tpu_custom_call.1} parent=55 // loop_body
            %v139 = vld [vmem:[%s137] sm:%s130]
            %140 = vst [vmem:[%s138] sm:%s130] %v139
          $region61: #{tpu_custom_call.1} parent=55 // loop_footer
            %s136 = sadd.s32 1, %s132
          $region62: #{tpu_custom_call.1} parent=55 // loop_footer_branch
            %131 = sbr.rel target = $region58
          $region63: #{tpu_custom_call.1} parent=55 // loop_exit
            _
        $region56: #{tpu_custom_call.1} parent=40 // pred_fallthru
          _
      $region41: #{tpu_custom_call.1} parent=20 // pred_fallthru
        _
      // Predicated region
      $region42: #{tpu_custom_call.1} parent=20 // pred_check
        _
      $region43: #{tpu_custom_call.1} parent=20 // pred_check_branch
        %114 = sbr.rel (0) target = $region45
      $region44: #{tpu_custom_call.1} parent=20 // pred_region
        %s116 = ssub.s32 2, 1
        loop: start=0, step=1, limit=1
        $region46: #{tpu_custom_call.1} parent=44 // loop_pre_header
          _
        $region47: #{tpu_custom_call.1} parent=44 // loop_header
          %s118 = sphi 0, %s122
          %p119 = scmp.ge.s32.totalorder %s118, 1
          %s123 = sphi %s6, %s6
          %s124 = sphi [#allocation7], [#allocation7]
        $region48: #{tpu_custom_call.1} parent=44 // loop_header_branch
          %121 = sbr.rel (%p119) target = $region52
        $region49: #{tpu_custom_call.1} parent=44 // loop_body
          %v125 = vld [vmem:[%s123] sm:%s116]
          %126 = vst [vmem:[%s124] sm:%s116] %v125
        $region50: #{tpu_custom_call.1} parent=44 // loop_footer
          %s122 = sadd.s32 1, %s118
        $region51: #{tpu_custom_call.1} parent=44 // loop_footer_branch
          %117 = sbr.rel target = $region47
        $region52: #{tpu_custom_call.1} parent=44 // loop_exit
          _
      $region45: #{tpu_custom_call.1} parent=20 // pred_fallthru
        _
      // Predicated region
      $region64: #{tpu_custom_call.1} parent=20 // pred_check
        _
      $region65: #{tpu_custom_call.1} parent=20 // pred_check_branch
        %143 = sbr.rel (0) target = $region67
      $region66: #{tpu_custom_call.1} parent=20 // pred_region
        %144 = vsyncadd %s110, 16
      $region67: #{tpu_custom_call.1} parent=20 // pred_fallthru
        _
    $region21: #{tpu_custom_call.1} parent=1 // pred_fallthru
      _
    %v145 = vld [vmem:[#allocation2] sm:$0xff]
    %v146 = vld [vmem:[#allocation2 + $0x8] sm:$0xff]
    %v147 = vld [vmem:[#allocation2 + $0x10] sm:$0xff]
    %v148 = vld [vmem:[#allocation2 + $0x18] sm:$0xff]
    %v149 = vld [vmem:[#allocation9] sm:$0xff]
    %v150 = vld [vmem:[#allocation9 + $0x8] sm:$0xff]
    %v151 = vld [vmem:[#allocation9 + $0x10] sm:$0xff]
    %v152 = vld [vmem:[#allocation9 + $0x18] sm:$0xff]
    %v153 = vld [vmem:[#allocation9 + $0x20] sm:$0xff]
    %v154 = vld [vmem:[#allocation9 + $0x28] sm:$0xff]
    %v155 = vld [vmem:[#allocation9 + $0x30] sm:$0xff]
    %v156 = vld [vmem:[#allocation9 + $0x38] sm:$0xff]
    %v157 = vpack.c.bf16 %v149, %v149
    %v158 = vpack.c.bf16 %v150, %v150
    %v159 = vpack.c.bf16 %v151, %v151
    %v160 = vpack.c.bf16 %v152, %v152
    %v161 = vpack.c.bf16 %v153, %v153
    %v162 = vpack.c.bf16 %v154, %v154
    %v163 = vpack.c.bf16 %v155, %v155
    %v164 = vpack.c.bf16 %v156, %v156
    %v165 = vld [vmem:[#allocation12] sm:$0xff]
    %v166 = vld [vmem:[#allocation12 + $0x8] sm:$0xff]
    %v167 = vld [vmem:[#allocation12 + $0x10] sm:$0xff]
    %v168 = vld [vmem:[#allocation12 + $0x18] sm:$0xff]
    %v169 = vld [vmem:[#allocation12 + $0x20] sm:$0xff]
    %v170 = vld [vmem:[#allocation12 + $0x28] sm:$0xff]
    %v171 = vld [vmem:[#allocation12 + $0x30] sm:$0xff]
    %v172 = vld [vmem:[#allocation12 + $0x38] sm:$0xff]
    %v173 = vld [vmem:[#allocation12 + $0x40] sm:$0xff]
    %v174 = vld [vmem:[#allocation12 + $0x48] sm:$0xff]
    %v175 = vld [vmem:[#allocation12 + $0x50] sm:$0xff]
    %v176 = vld [vmem:[#allocation12 + $0x58] sm:$0xff]
    %v177 = vld [vmem:[#allocation12 + $0x60] sm:$0xff]
    %v178 = vld [vmem:[#allocation12 + $0x68] sm:$0xff]
    %v179 = vld [vmem:[#allocation12 + $0x70] sm:$0xff]
    %v180 = vld [vmem:[#allocation12 + $0x78] sm:$0xff]
    %v181 = vld [vmem:[#allocation12 + $0x80] sm:$0xff]
    %v182 = vld [vmem:[#allocation12 + $0x88] sm:$0xff]
    %v183 = vld [vmem:[#allocation12 + $0x90] sm:$0xff]
    %v184 = vld [vmem:[#allocation12 + $0x98] sm:$0xff]
    %v185 = vld [vmem:[#allocation12 + $0xa0] sm:$0xff]
    %v186 = vld [vmem:[#allocation12 + $0xa8] sm:$0xff]
    %v187 = vld [vmem:[#allocation12 + $0xb0] sm:$0xff]
    %v188 = vld [vmem:[#allocation12 + $0xb8] sm:$0xff]
    %v189 = vld [vmem:[#allocation12 + $0xc0] sm:$0xff]
    %v190 = vld [vmem:[#allocation12 + $0xc8] sm:$0xff]
    %v191 = vld [vmem:[#allocation12 + $0xd0] sm:$0xff]
    %v192 = vld [vmem:[#allocation12 + $0xd8] sm:$0xff]
    %v193 = vld [vmem:[#allocation12 + $0xe0] sm:$0xff]
    %v194 = vld [vmem:[#allocation12 + $0xe8] sm:$0xff]
    %v195 = vld [vmem:[#allocation12 + $0xf0] sm:$0xff]
    %v196 = vld [vmem:[#allocation12 + $0xf8] sm:$0xff]
    %v197 = vld [vmem:[#allocation12 + $0x100] sm:$0xff]
    %v198 = vld [vmem:[#allocation12 + $0x108] sm:$0xff]
    %v199 = vld [vmem:[#allocation12 + $0x110] sm:$0xff]
    %v200 = vld [vmem:[#allocation12 + $0x118] sm:$0xff]
    %v201 = vld [vmem:[#allocation12 + $0x120] sm:$0xff]
    %v202 = vld [vmem:[#allocation12 + $0x128] sm:$0xff]
    %v203 = vld [vmem:[#allocation12 + $0x130] sm:$0xff]
    %v204 = vld [vmem:[#allocation12 + $0x138] sm:$0xff]
    %v205 = vld [vmem:[#allocation12 + $0x140] sm:$0xff]
    %v206 = vld [vmem:[#allocation12 + $0x148] sm:$0xff]
    %v207 = vld [vmem:[#allocation12 + $0x150] sm:$0xff]
    %v208 = vld [vmem:[#allocation12 + $0x158] sm:$0xff]
    %v209 = vld [vmem:[#allocation12 + $0x160] sm:$0xff]
    %v210 = vld [vmem:[#allocation12 + $0x168] sm:$0xff]
    %v211 = vld [vmem:[#allocation12 + $0x170] sm:$0xff]
    %v212 = vld [vmem:[#allocation12 + $0x178] sm:$0xff]
    %v213 = vld [vmem:[#allocation12 + $0x180] sm:$0xff]
    %v214 = vld [vmem:[#allocation12 + $0x188] sm:$0xff]
    %v215 = vld [vmem:[#allocation12 + $0x190] sm:$0xff]
    %v216 = vld [vmem:[#allocation12 + $0x198] sm:$0xff]
    %v217 = vld [vmem:[#allocation12 + $0x1a0] sm:$0xff]
    %v218 = vld [vmem:[#allocation12 + $0x1a8] sm:$0xff]
    %v219 = vld [vmem:[#allocation12 + $0x1b0] sm:$0xff]
    %v220 = vld [vmem:[#allocation12 + $0x1b8] sm:$0xff]
    %v221 = vld [vmem:[#allocation12 + $0x1c0] sm:$0xff]
    %v222 = vld [vmem:[#allocation12 + $0x1c8] sm:$0xff]
    %v223 = vld [vmem:[#allocation12 + $0x1d0] sm:$0xff]
    %v224 = vld [vmem:[#allocation12 + $0x1d8] sm:$0xff]
    %v225 = vld [vmem:[#allocation12 + $0x1e0] sm:$0xff]
    %v226 = vld [vmem:[#allocation12 + $0x1e8] sm:$0xff]
    %v227 = vld [vmem:[#allocation12 + $0x1f0] sm:$0xff]
    %v228 = vld [vmem:[#allocation12 + $0x1f8] sm:$0xff]
    %v229 = vld [vmem:[#allocation12 + $0x200] sm:$0xff]
    %v230 = vld [vmem:[#allocation12 + $0x208] sm:$0xff]
    %v231 = vld [vmem:[#allocation12 + $0x210] sm:$0xff]
    %v232 = vld [vmem:[#allocation12 + $0x218] sm:$0xff]
    %v233 = vld [vmem:[#allocation12 + $0x220] sm:$0xff]
    %v234 = vld [vmem:[#allocation12 + $0x228] sm:$0xff]
    %v235 = vld [vmem:[#allocation12 + $0x230] sm:$0xff]
    %v236 = vld [vmem:[#allocation12 + $0x238] sm:$0xff]
    %v237 = vld [vmem:[#allocation12 + $0x240] sm:$0xff]
    %v238 = vld [vmem:[#allocation12 + $0x248] sm:$0xff]
    %v239 = vld [vmem:[#allocation12 + $0x250] sm:$0xff]
    %v240 = vld [vmem:[#allocation12 + $0x258] sm:$0xff]
    %v241 = vld [vmem:[#allocation12 + $0x260] sm:$0xff]
    %v242 = vld [vmem:[#allocation12 + $0x268] sm:$0xff]
    %v243 = vld [vmem:[#allocation12 + $0x270] sm:$0xff]
    %v244 = vld [vmem:[#allocation12 + $0x278] sm:$0xff]
    %v245 = vld [vmem:[#allocation12 + $0x280] sm:$0xff]
    %v246 = vld [vmem:[#allocation12 + $0x288] sm:$0xff]
    %v247 = vld [vmem:[#allocation12 + $0x290] sm:$0xff]
    %v248 = vld [vmem:[#allocation12 + $0x298] sm:$0xff]
    %v249 = vld [vmem:[#allocation12 + $0x2a0] sm:$0xff]
    %v250 = vld [vmem:[#allocation12 + $0x2a8] sm:$0xff]
    %v251 = vld [vmem:[#allocation12 + $0x2b0] sm:$0xff]
    %v252 = vld [vmem:[#allocation12 + $0x2b8] sm:$0xff]
    %v253 = vld [vmem:[#allocation12 + $0x2c0] sm:$0xff]
    %v254 = vld [vmem:[#allocation12 + $0x2c8] sm:$0xff]
    %v255 = vld [vmem:[#allocation12 + $0x2d0] sm:$0xff]
    %v256 = vld [vmem:[#allocation12 + $0x2d8] sm:$0xff]
    %v257 = vld [vmem:[#allocation12 + $0x2e0] sm:$0xff]
    %v258 = vld [vmem:[#allocation12 + $0x2e8] sm:$0xff]
    %v259 = vld [vmem:[#allocation12 + $0x2f0] sm:$0xff]
    %v260 = vld [vmem:[#allocation12 + $0x2f8] sm:$0xff]
    %v261 = vld [vmem:[#allocation12 + $0x300] sm:$0xff]
    %v262 = vld [vmem:[#allocation12 + $0x308] sm:$0xff]
    %v263 = vld [vmem:[#allocation12 + $0x310] sm:$0xff]
    %v264 = vld [vmem:[#allocation12 + $0x318] sm:$0xff]
    %v265 = vld [vmem:[#allocation12 + $0x320] sm:$0xff]
    %v266 = vld [vmem:[#allocation12 + $0x328] sm:$0xff]
    %v267 = vld [vmem:[#allocation12 + $0x330] sm:$0xff]
    %v268 = vld [vmem:[#allocation12 + $0x338] sm:$0xff]
    %v269 = vld [vmem:[#allocation12 + $0x340] sm:$0xff]
    %v270 = vld [vmem:[#allocation12 + $0x348] sm:$0xff]
    %v271 = vld [vmem:[#allocation12 + $0x350] sm:$0xff]
    %v272 = vld [vmem:[#allocation12 + $0x358] sm:$0xff]
    %v273 = vld [vmem:[#allocation12 + $0x360] sm:$0xff]
    %v274 = vld [vmem:[#allocation12 + $0x368] sm:$0xff]
    %v275 = vld [vmem:[#allocation12 + $0x370] sm:$0xff]
    %v276 = vld [vmem:[#allocation12 + $0x378] sm:$0xff]
    %v277 = vld [vmem:[#allocation12 + $0x380] sm:$0xff]
    %v278 = vld [vmem:[#allocation12 + $0x388] sm:$0xff]
    %v279 = vld [vmem:[#allocation12 + $0x390] sm:$0xff]
    %v280 = vld [vmem:[#allocation12 + $0x398] sm:$0xff]
    %v281 = vld [vmem:[#allocation12 + $0x3a0] sm:$0xff]
    %v282 = vld [vmem:[#allocation12 + $0x3a8] sm:$0xff]
    %v283 = vld [vmem:[#allocation12 + $0x3b0] sm:$0xff]
    %v284 = vld [vmem:[#allocation12 + $0x3b8] sm:$0xff]
    %v285 = vld [vmem:[#allocation12 + $0x3c0] sm:$0xff]
    %v286 = vld [vmem:[#allocation12 + $0x3c8] sm:$0xff]
    %v287 = vld [vmem:[#allocation12 + $0x3d0] sm:$0xff]
    %v288 = vld [vmem:[#allocation12 + $0x3d8] sm:$0xff]
    %v289 = vld [vmem:[#allocation12 + $0x3e0] sm:$0xff]
    %v290 = vld [vmem:[#allocation12 + $0x3e8] sm:$0xff]
    %v291 = vld [vmem:[#allocation12 + $0x3f0] sm:$0xff]
    %v292 = vld [vmem:[#allocation12 + $0x3f8] sm:$0xff]
    %v293 = vld [vmem:[#allocation12 + $0x400] sm:$0xff]
    %v294 = vld [vmem:[#allocation12 + $0x408] sm:$0xff]
    %v295 = vld [vmem:[#allocation12 + $0x410] sm:$0xff]
    %v296 = vld [vmem:[#allocation12 + $0x418] sm:$0xff]
    %v297 = vld [vmem:[#allocation12 + $0x420] sm:$0xff]
    %v298 = vld [vmem:[#allocation12 + $0x428] sm:$0xff]
    %v299 = vld [vmem:[#allocation12 + $0x430] sm:$0xff]
    %v300 = vld [vmem:[#allocation12 + $0x438] sm:$0xff]
    %v301 = vld [vmem:[#allocation12 + $0x440] sm:$0xff]
    %v302 = vld [vmem:[#allocation12 + $0x448] sm:$0xff]
    %v303 = vld [vmem:[#allocation12 + $0x450] sm:$0xff]
    %v304 = vld [vmem:[#allocation12 + $0x458] sm:$0xff]
    %v305 = vld [vmem:[#allocation12 + $0x460] sm:$0xff]
    %v306 = vld [vmem:[#allocation12 + $0x468] sm:$0xff]
    %v307 = vld [vmem:[#allocation12 + $0x470] sm:$0xff]
    %v308 = vld [vmem:[#allocation12 + $0x478] sm:$0xff]
    %v309 = vld [vmem:[#allocation12 + $0x480] sm:$0xff]
    %v310 = vld [vmem:[#allocation12 + $0x488] sm:$0xff]
    %v311 = vld [vmem:[#allocation12 + $0x490] sm:$0xff]
    %v312 = vld [vmem:[#allocation12 + $0x498] sm:$0xff]
    %v313 = vld [vmem:[#allocation12 + $0x4a0] sm:$0xff]
    %v314 = vld [vmem:[#allocation12 + $0x4a8] sm:$0xff]
    %v315 = vld [vmem:[#allocation12 + $0x4b0] sm:$0xff]
    %v316 = vld [vmem:[#allocation12 + $0x4b8] sm:$0xff]
    %v317 = vld [vmem:[#allocation12 + $0x4c0] sm:$0xff]
    %v318 = vld [vmem:[#allocation12 + $0x4c8] sm:$0xff]
    %v319 = vld [vmem:[#allocation12 + $0x4d0] sm:$0xff]
    %v320 = vld [vmem:[#allocation12 + $0x4d8] sm:$0xff]
    %v321 = vld [vmem:[#allocation12 + $0x4e0] sm:$0xff]
    %v322 = vld [vmem:[#allocation12 + $0x4e8] sm:$0xff]
    %v323 = vld [vmem:[#allocation12 + $0x4f0] sm:$0xff]
    %v324 = vld [vmem:[#allocation12 + $0x4f8] sm:$0xff]
    %v325 = vld [vmem:[#allocation12 + $0x500] sm:$0xff]
    %v326 = vld [vmem:[#allocation12 + $0x508] sm:$0xff]
    %v327 = vld [vmem:[#allocation12 + $0x510] sm:$0xff]
    %v328 = vld [vmem:[#allocation12 + $0x518] sm:$0xff]
    %v329 = vld [vmem:[#allocation12 + $0x520] sm:$0xff]
    %v330 = vld [vmem:[#allocation12 + $0x528] sm:$0xff]
    %v331 = vld [vmem:[#allocation12 + $0x530] sm:$0xff]
    %v332 = vld [vmem:[#allocation12 + $0x538] sm:$0xff]
    %v333 = vld [vmem:[#allocation12 + $0x540] sm:$0xff]
    %v334 = vld [vmem:[#allocation12 + $0x548] sm:$0xff]
    %v335 = vld [vmem:[#allocation12 + $0x550] sm:$0xff]
    %v336 = vld [vmem:[#allocation12 + $0x558] sm:$0xff]
    %v337 = vld [vmem:[#allocation12 + $0x560] sm:$0xff]
    %v338 = vld [vmem:[#allocation12 + $0x568] sm:$0xff]
    %v339 = vld [vmem:[#allocation12 + $0x570] sm:$0xff]
    %v340 = vld [vmem:[#allocation12 + $0x578] sm:$0xff]
    %v341 = vld [vmem:[#allocation12 + $0x580] sm:$0xff]
    %v342 = vld [vmem:[#allocation12 + $0x588] sm:$0xff]
    %v343 = vld [vmem:[#allocation12 + $0x590] sm:$0xff]
    %v344 = vld [vmem:[#allocation12 + $0x598] sm:$0xff]
    %v345 = vld [vmem:[#allocation12 + $0x5a0] sm:$0xff]
    %v346 = vld [vmem:[#allocation12 + $0x5a8] sm:$0xff]
    %v347 = vld [vmem:[#allocation12 + $0x5b0] sm:$0xff]
    %v348 = vld [vmem:[#allocation12 + $0x5b8] sm:$0xff]
    %v349 = vld [vmem:[#allocation12 + $0x5c0] sm:$0xff]
    %v350 = vld [vmem:[#allocation12 + $0x5c8] sm:$0xff]
    %v351 = vld [vmem:[#allocation12 + $0x5d0] sm:$0xff]
    %v352 = vld [vmem:[#allocation12 + $0x5d8] sm:$0xff]
    %v353 = vld [vmem:[#allocation12 + $0x5e0] sm:$0xff]
    %v354 = vld [vmem:[#allocation12 + $0x5e8] sm:$0xff]
    %v355 = vld [vmem:[#allocation12 + $0x5f0] sm:$0xff]
    %v356 = vld [vmem:[#allocation12 + $0x5f8] sm:$0xff]
    %v357 = vld [vmem:[#allocation12 + $0x600] sm:$0xff]
    %v358 = vld [vmem:[#allocation12 + $0x608] sm:$0xff]
    %v359 = vld [vmem:[#allocation12 + $0x610] sm:$0xff]
    %v360 = vld [vmem:[#allocation12 + $0x618] sm:$0xff]
    %v361 = vld [vmem:[#allocation12 + $0x620] sm:$0xff]
    %v362 = vld [vmem:[#allocation12 + $0x628] sm:$0xff]
    %v363 = vld [vmem:[#allocation12 + $0x630] sm:$0xff]
    %v364 = vld [vmem:[#allocation12 + $0x638] sm:$0xff]
    %v365 = vld [vmem:[#allocation12 + $0x640] sm:$0xff]
    %v366 = vld [vmem:[#allocation12 + $0x648] sm:$0xff]
    %v367 = vld [vmem:[#allocation12 + $0x650] sm:$0xff]
    %v368 = vld [vmem:[#allocation12 + $0x658] sm:$0xff]
    %v369 = vld [vmem:[#allocation12 + $0x660] sm:$0xff]
    %v370 = vld [vmem:[#allocation12 + $0x668] sm:$0xff]
    %v371 = vld [vmem:[#allocation12 + $0x670] sm:$0xff]
    %v372 = vld [vmem:[#allocation12 + $0x678] sm:$0xff]
    %v373 = vld [vmem:[#allocation12 + $0x680] sm:$0xff]
    %v374 = vld [vmem:[#allocation12 + $0x688] sm:$0xff]
    %v375 = vld [vmem:[#allocation12 + $0x690] sm:$0xff]
    %v376 = vld [vmem:[#allocation12 + $0x698] sm:$0xff]
    %v377 = vld [vmem:[#allocation12 + $0x6a0] sm:$0xff]
    %v378 = vld [vmem:[#allocation12 + $0x6a8] sm:$0xff]
    %v379 = vld [vmem:[#allocation12 + $0x6b0] sm:$0xff]
    %v380 = vld [vmem:[#allocation12 + $0x6b8] sm:$0xff]
    %v381 = vld [vmem:[#allocation12 + $0x6c0] sm:$0xff]
    %v382 = vld [vmem:[#allocation12 + $0x6c8] sm:$0xff]
    %v383 = vld [vmem:[#allocation12 + $0x6d0] sm:$0xff]
    %v384 = vld [vmem:[#allocation12 + $0x6d8] sm:$0xff]
    %v385 = vld [vmem:[#allocation12 + $0x6e0] sm:$0xff]
    %v386 = vld [vmem:[#allocation12 + $0x6e8] sm:$0xff]
    %v387 = vld [vmem:[#allocation12 + $0x6f0] sm:$0xff]
    %v388 = vld [vmem:[#allocation12 + $0x6f8] sm:$0xff]
    %v389 = vld [vmem:[#allocation12 + $0x700] sm:$0xff]
    %v390 = vld [vmem:[#allocation12 + $0x708] sm:$0xff]
    %v391 = vld [vmem:[#allocation12 + $0x710] sm:$0xff]
    %v392 = vld [vmem:[#allocation12 + $0x718] sm:$0xff]
    %v393 = vld [vmem:[#allocation12 + $0x720] sm:$0xff]
    %v394 = vld [vmem:[#allocation12 + $0x728] sm:$0xff]
    %v395 = vld [vmem:[#allocation12 + $0x730] sm:$0xff]
    %v396 = vld [vmem:[#allocation12 + $0x738] sm:$0xff]
    %v397 = vld [vmem:[#allocation12 + $0x740] sm:$0xff]
    %v398 = vld [vmem:[#allocation12 + $0x748] sm:$0xff]
    %v399 = vld [vmem:[#allocation12 + $0x750] sm:$0xff]
    %v400 = vld [vmem:[#allocation12 + $0x758] sm:$0xff]
    %v401 = vld [vmem:[#allocation12 + $0x760] sm:$0xff]
    %v402 = vld [vmem:[#allocation12 + $0x768] sm:$0xff]
    %v403 = vld [vmem:[#allocation12 + $0x770] sm:$0xff]
    %v404 = vld [vmem:[#allocation12 + $0x778] sm:$0xff]
    %v405 = vld [vmem:[#allocation12 + $0x780] sm:$0xff]
    %v406 = vld [vmem:[#allocation12 + $0x788] sm:$0xff]
    %v407 = vld [vmem:[#allocation12 + $0x790] sm:$0xff]
    %v408 = vld [vmem:[#allocation12 + $0x798] sm:$0xff]
    %v409 = vld [vmem:[#allocation12 + $0x7a0] sm:$0xff]
    %v410 = vld [vmem:[#allocation12 + $0x7a8] sm:$0xff]
    %v411 = vld [vmem:[#allocation12 + $0x7b0] sm:$0xff]
    %v412 = vld [vmem:[#allocation12 + $0x7b8] sm:$0xff]
    %v413 = vld [vmem:[#allocation12 + $0x7c0] sm:$0xff]
    %v414 = vld [vmem:[#allocation12 + $0x7c8] sm:$0xff]
    %v415 = vld [vmem:[#allocation12 + $0x7d0] sm:$0xff]
    %v416 = vld [vmem:[#allocation12 + $0x7d8] sm:$0xff]
    %v417 = vld [vmem:[#allocation12 + $0x7e0] sm:$0xff]
    %v418 = vld [vmem:[#allocation12 + $0x7e8] sm:$0xff]
    %v419 = vld [vmem:[#allocation12 + $0x7f0] sm:$0xff]
    %v420 = vld [vmem:[#allocation12 + $0x7f8] sm:$0xff]
    %v677 = vunpack.c.l.b16 %v165
    %v678 = vunpack.c.h.b16 %v165
    %v679 = vunpack.c.l.b16 %v166
    %v680 = vunpack.c.h.b16 %v166
    %v681 = vunpack.c.l.b16 %v167
    %v682 = vunpack.c.h.b16 %v167
    %v683 = vunpack.c.l.b16 %v168
    %v684 = vunpack.c.h.b16 %v168
    %v685 = vunpack.c.l.b16 %v169
    %v686 = vunpack.c.h.b16 %v169
    %v687 = vunpack.c.l.b16 %v170
    %v688 = vunpack.c.h.b16 %v170
    %v689 = vunpack.c.l.b16 %v171
    %v690 = vunpack.c.h.b16 %v171
    %v691 = vunpack.c.l.b16 %v172
    %v692 = vunpack.c.h.b16 %v172
    %v693 = vunpack.c.l.b16 %v173
    %v694 = vunpack.c.h.b16 %v173
    %v695 = vunpack.c.l.b16 %v174
    %v696 = vunpack.c.h.b16 %v174
    %v697 = vunpack.c.l.b16 %v175
    %v698 = vunpack.c.h.b16 %v175
    %v699 = vunpack.c.l.b16 %v176
    %v700 = vunpack.c.h.b16 %v176
    %v701 = vunpack.c.l.b16 %v177
    %v702 = vunpack.c.h.b16 %v177
    %v703 = vunpack.c.l.b16 %v178
    %v704 = vunpack.c.h.b16 %v178
    %v705 = vunpack.c.l.b16 %v179
    %v706 = vunpack.c.h.b16 %v179
    %v707 = vunpack.c.l.b16 %v180
    %v708 = vunpack.c.h.b16 %v180
    %v709 = vunpack.c.l.b16 %v181
    %v710 = vunpack.c.h.b16 %v181
    %v711 = vunpack.c.l.b16 %v182
    %v712 = vunpack.c.h.b16 %v182
    %v713 = vunpack.c.l.b16 %v183
    %v714 = vunpack.c.h.b16 %v183
    %v715 = vunpack.c.l.b16 %v184
    %v716 = vunpack.c.h.b16 %v184
    %v717 = vunpack.c.l.b16 %v185
    %v718 = vunpack.c.h.b16 %v185
    %v719 = vunpack.c.l.b16 %v186
    %v720 = vunpack.c.h.b16 %v186
    %v721 = vunpack.c.l.b16 %v187
    %v722 = vunpack.c.h.b16 %v187
    %v723 = vunpack.c.l.b16 %v188
    %v724 = vunpack.c.h.b16 %v188
    %v725 = vunpack.c.l.b16 %v189
    %v726 = vunpack.c.h.b16 %v189
    %v727 = vunpack.c.l.b16 %v190
    %v728 = vunpack.c.h.b16 %v190
    %v729 = vunpack.c.l.b16 %v191
    %v730 = vunpack.c.h.b16 %v191
    %v731 = vunpack.c.l.b16 %v192
    %v732 = vunpack.c.h.b16 %v192
    %v733 = vunpack.c.l.b16 %v193
    %v734 = vunpack.c.h.b16 %v193
    %v735 = vunpack.c.l.b16 %v194
    %v736 = vunpack.c.h.b16 %v194
    %v737 = vunpack.c.l.b16 %v195
    %v738 = vunpack.c.h.b16 %v195
    %v739 = vunpack.c.l.b16 %v196
    %v740 = vunpack.c.h.b16 %v196
    %v741 = vunpack.c.l.b16 %v197
    %v742 = vunpack.c.h.b16 %v197
    %v743 = vunpack.c.l.b16 %v198
    %v744 = vunpack.c.h.b16 %v198
    %v745 = vunpack.c.l.b16 %v199
    %v746 = vunpack.c.h.b16 %v199
    %v747 = vunpack.c.l.b16 %v200
    %v748 = vunpack.c.h.b16 %v200
    %v749 = vunpack.c.l.b16 %v201
    %v750 = vunpack.c.h.b16 %v201
    %v751 = vunpack.c.l.b16 %v202
    %v752 = vunpack.c.h.b16 %v202
    %v753 = vunpack.c.l.b16 %v203
    %v754 = vunpack.c.h.b16 %v203
    %v755 = vunpack.c.l.b16 %v204
    %v756 = vunpack.c.h.b16 %v204
    %v757 = vunpack.c.l.b16 %v205
    %v758 = vunpack.c.h.b16 %v205
    %v759 = vunpack.c.l.b16 %v206
    %v760 = vunpack.c.h.b16 %v206
    %v761 = vunpack.c.l.b16 %v207
    %v762 = vunpack.c.h.b16 %v207
    %v763 = vunpack.c.l.b16 %v208
    %v764 = vunpack.c.h.b16 %v208
    %v765 = vunpack.c.l.b16 %v209
    %v766 = vunpack.c.h.b16 %v209
    %v767 = vunpack.c.l.b16 %v210
    %v768 = vunpack.c.h.b16 %v210
    %v769 = vunpack.c.l.b16 %v211
    %v770 = vunpack.c.h.b16 %v211
    %v771 = vunpack.c.l.b16 %v212
    %v772 = vunpack.c.h.b16 %v212
    %v773 = vunpack.c.l.b16 %v213
    %v774 = vunpack.c.h.b16 %v213
    %v775 = vunpack.c.l.b16 %v214
    %v776 = vunpack.c.h.b16 %v214
    %v777 = vunpack.c.l.b16 %v215
    %v778 = vunpack.c.h.b16 %v215
    %v779 = vunpack.c.l.b16 %v216
    %v780 = vunpack.c.h.b16 %v216
    %v781 = vunpack.c.l.b16 %v217
    %v782 = vunpack.c.h.b16 %v217
    %v783 = vunpack.c.l.b16 %v218
    %v784 = vunpack.c.h.b16 %v218
    %v785 = vunpack.c.l.b16 %v219
    %v786 = vunpack.c.h.b16 %v219
    %v787 = vunpack.c.l.b16 %v220
    %v788 = vunpack.c.h.b16 %v220
    %v789 = vunpack.c.l.b16 %v221
    %v790 = vunpack.c.h.b16 %v221
    %v791 = vunpack.c.l.b16 %v222
    %v792 = vunpack.c.h.b16 %v222
    %v793 = vunpack.c.l.b16 %v223
    %v794 = vunpack.c.h.b16 %v223
    %v795 = vunpack.c.l.b16 %v224
    %v796 = vunpack.c.h.b16 %v224
    %v797 = vunpack.c.l.b16 %v225
    %v798 = vunpack.c.h.b16 %v225
    %v799 = vunpack.c.l.b16 %v226
    %v800 = vunpack.c.h.b16 %v226
    %v801 = vunpack.c.l.b16 %v227
    %v802 = vunpack.c.h.b16 %v227
    %v803 = vunpack.c.l.b16 %v228
    %v804 = vunpack.c.h.b16 %v228
    %v805 = vunpack.c.l.b16 %v229
    %v806 = vunpack.c.h.b16 %v229
    %v807 = vunpack.c.l.b16 %v230
    %v808 = vunpack.c.h.b16 %v230
    %v809 = vunpack.c.l.b16 %v231
    %v810 = vunpack.c.h.b16 %v231
    %v811 = vunpack.c.l.b16 %v232
    %v812 = vunpack.c.h.b16 %v232
    %v813 = vunpack.c.l.b16 %v233
    %v814 = vunpack.c.h.b16 %v233
    %v815 = vunpack.c.l.b16 %v234
    %v816 = vunpack.c.h.b16 %v234
    %v817 = vunpack.c.l.b16 %v235
    %v818 = vunpack.c.h.b16 %v235
    %v819 = vunpack.c.l.b16 %v236
    %v820 = vunpack.c.h.b16 %v236
    %v821 = vunpack.c.l.b16 %v237
    %v822 = vunpack.c.h.b16 %v237
    %v823 = vunpack.c.l.b16 %v238
    %v824 = vunpack.c.h.b16 %v238
    %v825 = vunpack.c.l.b16 %v239
    %v826 = vunpack.c.h.b16 %v239
    %v827 = vunpack.c.l.b16 %v240
    %v828 = vunpack.c.h.b16 %v240
    %v829 = vunpack.c.l.b16 %v241
    %v830 = vunpack.c.h.b16 %v241
    %v831 = vunpack.c.l.b16 %v242
    %v832 = vunpack.c.h.b16 %v242
    %v833 = vunpack.c.l.b16 %v243
    %v834 = vunpack.c.h.b16 %v243
    %v835 = vunpack.c.l.b16 %v244
    %v836 = vunpack.c.h.b16 %v244
    %v837 = vunpack.c.l.b16 %v245
    %v838 = vunpack.c.h.b16 %v245
    %v839 = vunpack.c.l.b16 %v246
    %v840 = vunpack.c.h.b16 %v246
    %v841 = vunpack.c.l.b16 %v247
    %v842 = vunpack.c.h.b16 %v247
    %v843 = vunpack.c.l.b16 %v248
    %v844 = vunpack.c.h.b16 %v248
    %v845 = vunpack.c.l.b16 %v249
    %v846 = vunpack.c.h.b16 %v249
    %v847 = vunpack.c.l.b16 %v250
    %v848 = vunpack.c.h.b16 %v250
    %v849 = vunpack.c.l.b16 %v251
    %v850 = vunpack.c.h.b16 %v251
    %v851 = vunpack.c.l.b16 %v252
    %v852 = vunpack.c.h.b16 %v252
    %v853 = vunpack.c.l.b16 %v253
    %v854 = vunpack.c.h.b16 %v253
    %v855 = vunpack.c.l.b16 %v254
    %v856 = vunpack.c.h.b16 %v254
    %v857 = vunpack.c.l.b16 %v255
    %v858 = vunpack.c.h.b16 %v255
    %v859 = vunpack.c.l.b16 %v256
    %v860 = vunpack.c.h.b16 %v256
    %v861 = vunpack.c.l.b16 %v257
    %v862 = vunpack.c.h.b16 %v257
    %v863 = vunpack.c.l.b16 %v258
    %v864 = vunpack.c.h.b16 %v258
    %v865 = vunpack.c.l.b16 %v259
    %v866 = vunpack.c.h.b16 %v259
    %v867 = vunpack.c.l.b16 %v260
    %v868 = vunpack.c.h.b16 %v260
    %v869 = vunpack.c.l.b16 %v261
    %v870 = vunpack.c.h.b16 %v261
    %v871 = vunpack.c.l.b16 %v262
    %v872 = vunpack.c.h.b16 %v262
    %v873 = vunpack.c.l.b16 %v263
    %v874 = vunpack.c.h.b16 %v263
    %v875 = vunpack.c.l.b16 %v264
    %v876 = vunpack.c.h.b16 %v264
    %v877 = vunpack.c.l.b16 %v265
    %v878 = vunpack.c.h.b16 %v265
    %v879 = vunpack.c.l.b16 %v266
    %v880 = vunpack.c.h.b16 %v266
    %v881 = vunpack.c.l.b16 %v267
    %v882 = vunpack.c.h.b16 %v267
    %v883 = vunpack.c.l.b16 %v268
    %v884 = vunpack.c.h.b16 %v268
    %v885 = vunpack.c.l.b16 %v269
    %v886 = vunpack.c.h.b16 %v269
    %v887 = vunpack.c.l.b16 %v270
    %v888 = vunpack.c.h.b16 %v270
    %v889 = vunpack.c.l.b16 %v271
    %v890 = vunpack.c.h.b16 %v271
    %v891 = vunpack.c.l.b16 %v272
    %v892 = vunpack.c.h.b16 %v272
    %v893 = vunpack.c.l.b16 %v273
    %v894 = vunpack.c.h.b16 %v273
    %v895 = vunpack.c.l.b16 %v274
    %v896 = vunpack.c.h.b16 %v274
    %v897 = vunpack.c.l.b16 %v275
    %v898 = vunpack.c.h.b16 %v275
    %v899 = vunpack.c.l.b16 %v276
    %v900 = vunpack.c.h.b16 %v276
    %v901 = vunpack.c.l.b16 %v277
    %v902 = vunpack.c.h.b16 %v277
    %v903 = vunpack.c.l.b16 %v278
    %v904 = vunpack.c.h.b16 %v278
    %v905 = vunpack.c.l.b16 %v279
    %v906 = vunpack.c.h.b16 %v279
    %v907 = vunpack.c.l.b16 %v280
    %v908 = vunpack.c.h.b16 %v280
    %v909 = vunpack.c.l.b16 %v281
    %v910 = vunpack.c.h.b16 %v281
    %v911 = vunpack.c.l.b16 %v282
    %v912 = vunpack.c.h.b16 %v282
    %v913 = vunpack.c.l.b16 %v283
    %v914 = vunpack.c.h.b16 %v283
    %v915 = vunpack.c.l.b16 %v284
    %v916 = vunpack.c.h.b16 %v284
    %v917 = vunpack.c.l.b16 %v285
    %v918 = vunpack.c.h.b16 %v285
    %v919 = vunpack.c.l.b16 %v286
    %v920 = vunpack.c.h.b16 %v286
    %v921 = vunpack.c.l.b16 %v287
    %v922 = vunpack.c.h.b16 %v287
    %v923 = vunpack.c.l.b16 %v288
    %v924 = vunpack.c.h.b16 %v288
    %v925 = vunpack.c.l.b16 %v289
    %v926 = vunpack.c.h.b16 %v289
    %v927 = vunpack.c.l.b16 %v290
    %v928 = vunpack.c.h.b16 %v290
    %v929 = vunpack.c.l.b16 %v291
    %v930 = vunpack.c.h.b16 %v291
    %v931 = vunpack.c.l.b16 %v292
    %v932 = vunpack.c.h.b16 %v292
    %v933 = vunpack.c.l.b16 %v293
    %v934 = vunpack.c.h.b16 %v293
    %v935 = vunpack.c.l.b16 %v294
    %v936 = vunpack.c.h.b16 %v294
    %v937 = vunpack.c.l.b16 %v295
    %v938 = vunpack.c.h.b16 %v295
    %v939 = vunpack.c.l.b16 %v296
    %v940 = vunpack.c.h.b16 %v296
    %v941 = vunpack.c.l.b16 %v297
    %v942 = vunpack.c.h.b16 %v297
    %v943 = vunpack.c.l.b16 %v298
    %v944 = vunpack.c.h.b16 %v298
    %v945 = vunpack.c.l.b16 %v299
    %v946 = vunpack.c.h.b16 %v299
    %v947 = vunpack.c.l.b16 %v300
    %v948 = vunpack.c.h.b16 %v300
    %v949 = vunpack.c.l.b16 %v301
    %v950 = vunpack.c.h.b16 %v301
    %v951 = vunpack.c.l.b16 %v302
    %v952 = vunpack.c.h.b16 %v302
    %v953 = vunpack.c.l.b16 %v303
    %v954 = vunpack.c.h.b16 %v303
    %v955 = vunpack.c.l.b16 %v304
    %v956 = vunpack.c.h.b16 %v304
    %v957 = vunpack.c.l.b16 %v305
    %v958 = vunpack.c.h.b16 %v305
    %v959 = vunpack.c.l.b16 %v306
    %v960 = vunpack.c.h.b16 %v306
    %v961 = vunpack.c.l.b16 %v307
    %v962 = vunpack.c.h.b16 %v307
    %v963 = vunpack.c.l.b16 %v308
    %v964 = vunpack.c.h.b16 %v308
    %v965 = vunpack.c.l.b16 %v309
    %v966 = vunpack.c.h.b16 %v309
    %v967 = vunpack.c.l.b16 %v310
    %v968 = vunpack.c.h.b16 %v310
    %v969 = vunpack.c.l.b16 %v311
    %v970 = vunpack.c.h.b16 %v311
    %v971 = vunpack.c.l.b16 %v312
    %v972 = vunpack.c.h.b16 %v312
    %v973 = vunpack.c.l.b16 %v313
    %v974 = vunpack.c.h.b16 %v313
    %v975 = vunpack.c.l.b16 %v314
    %v976 = vunpack.c.h.b16 %v314
    %v977 = vunpack.c.l.b16 %v315
    %v978 = vunpack.c.h.b16 %v315
    %v979 = vunpack.c.l.b16 %v316
    %v980 = vunpack.c.h.b16 %v316
    %v981 = vunpack.c.l.b16 %v317
    %v982 = vunpack.c.h.b16 %v317
    %v983 = vunpack.c.l.b16 %v318
    %v984 = vunpack.c.h.b16 %v318
    %v985 = vunpack.c.l.b16 %v319
    %v986 = vunpack.c.h.b16 %v319
    %v987 = vunpack.c.l.b16 %v320
    %v988 = vunpack.c.h.b16 %v320
    %v989 = vunpack.c.l.b16 %v321
    %v990 = vunpack.c.h.b16 %v321
    %v991 = vunpack.c.l.b16 %v322
    %v992 = vunpack.c.h.b16 %v322
    %v993 = vunpack.c.l.b16 %v323
    %v994 = vunpack.c.h.b16 %v323
    %v995 = vunpack.c.l.b16 %v324
    %v996 = vunpack.c.h.b16 %v324
    %v997 = vunpack.c.l.b16 %v325
    %v998 = vunpack.c.h.b16 %v325
    %v999 = vunpack.c.l.b16 %v326
    %v1000 = vunpack.c.h.b16 %v326
    %v1001 = vunpack.c.l.b16 %v327
    %v1002 = vunpack.c.h.b16 %v327
    %v1003 = vunpack.c.l.b16 %v328
    %v1004 = vunpack.c.h.b16 %v328
    %v1005 = vunpack.c.l.b16 %v329
    %v1006 = vunpack.c.h.b16 %v329
    %v1007 = vunpack.c.l.b16 %v330
    %v1008 = vunpack.c.h.b16 %v330
    %v1009 = vunpack.c.l.b16 %v331
    %v1010 = vunpack.c.h.b16 %v331
    %v1011 = vunpack.c.l.b16 %v332
    %v1012 = vunpack.c.h.b16 %v332
    %v1013 = vunpack.c.l.b16 %v333
    %v1014 = vunpack.c.h.b16 %v333
    %v1015 = vunpack.c.l.b16 %v334
    %v1016 = vunpack.c.h.b16 %v334
    %v1017 = vunpack.c.l.b16 %v335
    %v1018 = vunpack.c.h.b16 %v335
    %v1019 = vunpack.c.l.b16 %v336
    %v1020 = vunpack.c.h.b16 %v336
    %v1021 = vunpack.c.l.b16 %v337
    %v1022 = vunpack.c.h.b16 %v337
    %v1023 = vunpack.c.l.b16 %v338
    %v1024 = vunpack.c.h.b16 %v338
    %v1025 = vunpack.c.l.b16 %v339
    %v1026 = vunpack.c.h.b16 %v339
    %v1027 = vunpack.c.l.b16 %v340
    %v1028 = vunpack.c.h.b16 %v340
    %v1029 = vunpack.c.l.b16 %v341
    %v1030 = vunpack.c.h.b16 %v341
    %v1031 = vunpack.c.l.b16 %v342
    %v1032 = vunpack.c.h.b16 %v342
    %v1033 = vunpack.c.l.b16 %v343
    %v1034 = vunpack.c.h.b16 %v343
    %v1035 = vunpack.c.l.b16 %v344
    %v1036 = vunpack.c.h.b16 %v344
    %v1037 = vunpack.c.l.b16 %v345
    %v1038 = vunpack.c.h.b16 %v345
    %v1039 = vunpack.c.l.b16 %v346
    %v1040 = vunpack.c.h.b16 %v346
    %v1041 = vunpack.c.l.b16 %v347
    %v1042 = vunpack.c.h.b16 %v347
    %v1043 = vunpack.c.l.b16 %v348
    %v1044 = vunpack.c.h.b16 %v348
    %v1045 = vunpack.c.l.b16 %v349
    %v1046 = vunpack.c.h.b16 %v349
    %v1047 = vunpack.c.l.b16 %v350
    %v1048 = vunpack.c.h.b16 %v350
    %v1049 = vunpack.c.l.b16 %v351
    %v1050 = vunpack.c.h.b16 %v351
    %v1051 = vunpack.c.l.b16 %v352
    %v1052 = vunpack.c.h.b16 %v352
    %v1053 = vunpack.c.l.b16 %v353
    %v1054 = vunpack.c.h.b16 %v353
    %v1055 = vunpack.c.l.b16 %v354
    %v1056 = vunpack.c.h.b16 %v354
    %v1057 = vunpack.c.l.b16 %v355
    %v1058 = vunpack.c.h.b16 %v355
    %v1059 = vunpack.c.l.b16 %v356
    %v1060 = vunpack.c.h.b16 %v356
    %v1061 = vunpack.c.l.b16 %v357
    %v1062 = vunpack.c.h.b16 %v357
    %v1063 = vunpack.c.l.b16 %v358
    %v1064 = vunpack.c.h.b16 %v358
    %v1065 = vunpack.c.l.b16 %v359
    %v1066 = vunpack.c.h.b16 %v359
    %v1067 = vunpack.c.l.b16 %v360
    %v1068 = vunpack.c.h.b16 %v360
    %v1069 = vunpack.c.l.b16 %v361
    %v1070 = vunpack.c.h.b16 %v361
    %v1071 = vunpack.c.l.b16 %v362
    %v1072 = vunpack.c.h.b16 %v362
    %v1073 = vunpack.c.l.b16 %v363
    %v1074 = vunpack.c.h.b16 %v363
    %v1075 = vunpack.c.l.b16 %v364
    %v1076 = vunpack.c.h.b16 %v364
    %v1077 = vunpack.c.l.b16 %v365
    %v1078 = vunpack.c.h.b16 %v365
    %v1079 = vunpack.c.l.b16 %v366
    %v1080 = vunpack.c.h.b16 %v366
    %v1081 = vunpack.c.l.b16 %v367
    %v1082 = vunpack.c.h.b16 %v367
    %v1083 = vunpack.c.l.b16 %v368
    %v1084 = vunpack.c.h.b16 %v368
    %v1085 = vunpack.c.l.b16 %v369
    %v1086 = vunpack.c.h.b16 %v369
    %v1087 = vunpack.c.l.b16 %v370
    %v1088 = vunpack.c.h.b16 %v370
    %v1089 = vunpack.c.l.b16 %v371
    %v1090 = vunpack.c.h.b16 %v371
    %v1091 = vunpack.c.l.b16 %v372
    %v1092 = vunpack.c.h.b16 %v372
    %v1093 = vunpack.c.l.b16 %v373
    %v1094 = vunpack.c.h.b16 %v373
    %v1095 = vunpack.c.l.b16 %v374
    %v1096 = vunpack.c.h.b16 %v374
    %v1097 = vunpack.c.l.b16 %v375
    %v1098 = vunpack.c.h.b16 %v375
    %v1099 = vunpack.c.l.b16 %v376
    %v1100 = vunpack.c.h.b16 %v376
    %v1101 = vunpack.c.l.b16 %v377
    %v1102 = vunpack.c.h.b16 %v377
    %v1103 = vunpack.c.l.b16 %v378
    %v1104 = vunpack.c.h.b16 %v378
    %v1105 = vunpack.c.l.b16 %v379
    %v1106 = vunpack.c.h.b16 %v379
    %v1107 = vunpack.c.l.b16 %v380
    %v1108 = vunpack.c.h.b16 %v380
    %v1109 = vunpack.c.l.b16 %v381
    %v1110 = vunpack.c.h.b16 %v381
    %v1111 = vunpack.c.l.b16 %v382
    %v1112 = vunpack.c.h.b16 %v382
    %v1113 = vunpack.c.l.b16 %v383
    %v1114 = vunpack.c.h.b16 %v383
    %v1115 = vunpack.c.l.b16 %v384
    %v1116 = vunpack.c.h.b16 %v384
    %v1117 = vunpack.c.l.b16 %v385
    %v1118 = vunpack.c.h.b16 %v385
    %v1119 = vunpack.c.l.b16 %v386
    %v1120 = vunpack.c.h.b16 %v386
    %v1121 = vunpack.c.l.b16 %v387
    %v1122 = vunpack.c.h.b16 %v387
    %v1123 = vunpack.c.l.b16 %v388
    %v1124 = vunpack.c.h.b16 %v388
    %v1125 = vunpack.c.l.b16 %v389
    %v1126 = vunpack.c.h.b16 %v389
    %v1127 = vunpack.c.l.b16 %v390
    %v1128 = vunpack.c.h.b16 %v390
    %v1129 = vunpack.c.l.b16 %v391
    %v1130 = vunpack.c.h.b16 %v391
    %v1131 = vunpack.c.l.b16 %v392
    %v1132 = vunpack.c.h.b16 %v392
    %v1133 = vunpack.c.l.b16 %v393
    %v1134 = vunpack.c.h.b16 %v393
    %v1135 = vunpack.c.l.b16 %v394
    %v1136 = vunpack.c.h.b16 %v394
    %v1137 = vunpack.c.l.b16 %v395
    %v1138 = vunpack.c.h.b16 %v395
    %v1139 = vunpack.c.l.b16 %v396
    %v1140 = vunpack.c.h.b16 %v396
    %v1141 = vunpack.c.l.b16 %v397
    %v1142 = vunpack.c.h.b16 %v397
    %v1143 = vunpack.c.l.b16 %v398
    %v1144 = vunpack.c.h.b16 %v398
    %v1145 = vunpack.c.l.b16 %v399
    %v1146 = vunpack.c.h.b16 %v399
    %v1147 = vunpack.c.l.b16 %v400
    %v1148 = vunpack.c.h.b16 %v400
    %v1149 = vunpack.c.l.b16 %v401
    %v1150 = vunpack.c.h.b16 %v401
    %v1151 = vunpack.c.l.b16 %v402
    %v1152 = vunpack.c.h.b16 %v402
    %v1153 = vunpack.c.l.b16 %v403
    %v1154 = vunpack.c.h.b16 %v403
    %v1155 = vunpack.c.l.b16 %v404
    %v1156 = vunpack.c.h.b16 %v404
    %v1157 = vunpack.c.l.b16 %v405
    %v1158 = vunpack.c.h.b16 %v405
    %v1159 = vunpack.c.l.b16 %v406
    %v1160 = vunpack.c.h.b16 %v406
    %v1161 = vunpack.c.l.b16 %v407
    %v1162 = vunpack.c.h.b16 %v407
    %v1163 = vunpack.c.l.b16 %v408
    %v1164 = vunpack.c.h.b16 %v408
    %v1165 = vunpack.c.l.b16 %v409
    %v1166 = vunpack.c.h.b16 %v409
    %v1167 = vunpack.c.l.b16 %v410
    %v1168 = vunpack.c.h.b16 %v410
    %v1169 = vunpack.c.l.b16 %v411
    %v1170 = vunpack.c.h.b16 %v411
    %v1171 = vunpack.c.l.b16 %v412
    %v1172 = vunpack.c.h.b16 %v412
    %v1173 = vunpack.c.l.b16 %v413
    %v1174 = vunpack.c.h.b16 %v413
    %v1175 = vunpack.c.l.b16 %v414
    %v1176 = vunpack.c.h.b16 %v414
    %v1177 = vunpack.c.l.b16 %v415
    %v1178 = vunpack.c.h.b16 %v415
    %v1179 = vunpack.c.l.b16 %v416
    %v1180 = vunpack.c.h.b16 %v416
    %v1181 = vunpack.c.l.b16 %v417
    %v1182 = vunpack.c.h.b16 %v417
    %v1183 = vunpack.c.l.b16 %v418
    %v1184 = vunpack.c.h.b16 %v418
    %v1185 = vunpack.c.l.b16 %v419
    %v1186 = vunpack.c.h.b16 %v419
    %v1187 = vunpack.c.l.b16 %v420
    %v1188 = vunpack.c.h.b16 %v420
    %v1189 = vpack.c.b16 %v681, %v677
    %v1190 = vpack.c.b16 %v682, %v678
    %v1191 = vpack.c.b16 %v683, %v679
    %v1192 = vpack.c.b16 %v684, %v680
    %v1193 = vpack.c.b16 %v689, %v685
    %v1194 = vpack.c.b16 %v690, %v686
    %v1195 = vpack.c.b16 %v691, %v687
    %v1196 = vpack.c.b16 %v692, %v688
    %v1197 = vpack.c.b16 %v697, %v693
    %v1198 = vpack.c.b16 %v698, %v694
    %v1199 = vpack.c.b16 %v699, %v695
    %v1200 = vpack.c.b16 %v700, %v696
    %v1201 = vpack.c.b16 %v705, %v701
    %v1202 = vpack.c.b16 %v706, %v702
    %v1203 = vpack.c.b16 %v707, %v703
    %v1204 = vpack.c.b16 %v708, %v704
    %v1205 = vpack.c.b16 %v713, %v709
    %v1206 = vpack.c.b16 %v714, %v710
    %v1207 = vpack.c.b16 %v715, %v711
    %v1208 = vpack.c.b16 %v716, %v712
    %v1209 = vpack.c.b16 %v721, %v717
    %v1210 = vpack.c.b16 %v722, %v718
    %v1211 = vpack.c.b16 %v723, %v719
    %v1212 = vpack.c.b16 %v724, %v720
    %v1213 = vpack.c.b16 %v729, %v725
    %v1214 = vpack.c.b16 %v730, %v726
    %v1215 = vpack.c.b16 %v731, %v727
    %v1216 = vpack.c.b16 %v732, %v728
    %v1217 = vpack.c.b16 %v737, %v733
    %v1218 = vpack.c.b16 %v738, %v734
    %v1219 = vpack.c.b16 %v739, %v735
    %v1220 = vpack.c.b16 %v740, %v736
    %v1221 = vpack.c.b16 %v745, %v741
    %v1222 = vpack.c.b16 %v746, %v742
    %v1223 = vpack.c.b16 %v747, %v743
    %v1224 = vpack.c.b16 %v748, %v744
    %v1225 = vpack.c.b16 %v753, %v749
    %v1226 = vpack.c.b16 %v754, %v750
    %v1227 = vpack.c.b16 %v755, %v751
    %v1228 = vpack.c.b16 %v756, %v752
    %v1229 = vpack.c.b16 %v761, %v757
    %v1230 = vpack.c.b16 %v762, %v758
    %v1231 = vpack.c.b16 %v763, %v759
    %v1232 = vpack.c.b16 %v764, %v760
    %v1233 = vpack.c.b16 %v769, %v765
    %v1234 = vpack.c.b16 %v770, %v766
    %v1235 = vpack.c.b16 %v771, %v767
    %v1236 = vpack.c.b16 %v772, %v768
    %v1237 = vpack.c.b16 %v777, %v773
    %v1238 = vpack.c.b16 %v778, %v774
    %v1239 = vpack.c.b16 %v779, %v775
    %v1240 = vpack.c.b16 %v780, %v776
    %v1241 = vpack.c.b16 %v785, %v781
    %v1242 = vpack.c.b16 %v786, %v782
    %v1243 = vpack.c.b16 %v787, %v783
    %v1244 = vpack.c.b16 %v788, %v784
    %v1245 = vpack.c.b16 %v793, %v789
    %v1246 = vpack.c.b16 %v794, %v790
    %v1247 = vpack.c.b16 %v795, %v791
    %v1248 = vpack.c.b16 %v796, %v792
    %v1249 = vpack.c.b16 %v801, %v797
    %v1250 = vpack.c.b16 %v802, %v798
    %v1251 = vpack.c.b16 %v803, %v799
    %v1252 = vpack.c.b16 %v804, %v800
    %v1253 = vpack.c.b16 %v809, %v805
    %v1254 = vpack.c.b16 %v810, %v806
    %v1255 = vpack.c.b16 %v811, %v807
    %v1256 = vpack.c.b16 %v812, %v808
    %v1257 = vpack.c.b16 %v817, %v813
    %v1258 = vpack.c.b16 %v818, %v814
    %v1259 = vpack.c.b16 %v819, %v815
    %v1260 = vpack.c.b16 %v820, %v816
    %v1261 = vpack.c.b16 %v825, %v821
    %v1262 = vpack.c.b16 %v826, %v822
    %v1263 = vpack.c.b16 %v827, %v823
    %v1264 = vpack.c.b16 %v828, %v824
    %v1265 = vpack.c.b16 %v833, %v829
    %v1266 = vpack.c.b16 %v834, %v830
    %v1267 = vpack.c.b16 %v835, %v831
    %v1268 = vpack.c.b16 %v836, %v832
    %v1269 = vpack.c.b16 %v841, %v837
    %v1270 = vpack.c.b16 %v842, %v838
    %v1271 = vpack.c.b16 %v843, %v839
    %v1272 = vpack.c.b16 %v844, %v840
    %v1273 = vpack.c.b16 %v849, %v845
    %v1274 = vpack.c.b16 %v850, %v846
    %v1275 = vpack.c.b16 %v851, %v847
    %v1276 = vpack.c.b16 %v852, %v848
    %v1277 = vpack.c.b16 %v857, %v853
    %v1278 = vpack.c.b16 %v858, %v854
    %v1279 = vpack.c.b16 %v859, %v855
    %v1280 = vpack.c.b16 %v860, %v856
    %v1281 = vpack.c.b16 %v865, %v861
    %v1282 = vpack.c.b16 %v866, %v862
    %v1283 = vpack.c.b16 %v867, %v863
    %v1284 = vpack.c.b16 %v868, %v864
    %v1285 = vpack.c.b16 %v873, %v869
    %v1286 = vpack.c.b16 %v874, %v870
    %v1287 = vpack.c.b16 %v875, %v871
    %v1288 = vpack.c.b16 %v876, %v872
    %v1289 = vpack.c.b16 %v881, %v877
    %v1290 = vpack.c.b16 %v882, %v878
    %v1291 = vpack.c.b16 %v883, %v879
    %v1292 = vpack.c.b16 %v884, %v880
    %v1293 = vpack.c.b16 %v889, %v885
    %v1294 = vpack.c.b16 %v890, %v886
    %v1295 = vpack.c.b16 %v891, %v887
    %v1296 = vpack.c.b16 %v892, %v888
    %v1297 = vpack.c.b16 %v897, %v893
    %v1298 = vpack.c.b16 %v898, %v894
    %v1299 = vpack.c.b16 %v899, %v895
    %v1300 = vpack.c.b16 %v900, %v896
    %v1301 = vpack.c.b16 %v905, %v901
    %v1302 = vpack.c.b16 %v906, %v902
    %v1303 = vpack.c.b16 %v907, %v903
    %v1304 = vpack.c.b16 %v908, %v904
    %v1305 = vpack.c.b16 %v913, %v909
    %v1306 = vpack.c.b16 %v914, %v910
    %v1307 = vpack.c.b16 %v915, %v911
    %v1308 = vpack.c.b16 %v916, %v912
    %v1309 = vpack.c.b16 %v921, %v917
    %v1310 = vpack.c.b16 %v922, %v918
    %v1311 = vpack.c.b16 %v923, %v919
    %v1312 = vpack.c.b16 %v924, %v920
    %v1313 = vpack.c.b16 %v929, %v925
    %v1314 = vpack.c.b16 %v930, %v926
    %v1315 = vpack.c.b16 %v931, %v927
    %v1316 = vpack.c.b16 %v932, %v928
    %v1317 = vpack.c.b16 %v937, %v933
    %v1318 = vpack.c.b16 %v938, %v934
    %v1319 = vpack.c.b16 %v939, %v935
    %v1320 = vpack.c.b16 %v940, %v936
    %v1321 = vpack.c.b16 %v945, %v941
    %v1322 = vpack.c.b16 %v946, %v942
    %v1323 = vpack.c.b16 %v947, %v943
    %v1324 = vpack.c.b16 %v948, %v944
    %v1325 = vpack.c.b16 %v953, %v949
    %v1326 = vpack.c.b16 %v954, %v950
    %v1327 = vpack.c.b16 %v955, %v951
    %v1328 = vpack.c.b16 %v956, %v952
    %v1329 = vpack.c.b16 %v961, %v957
    %v1330 = vpack.c.b16 %v962, %v958
    %v1331 = vpack.c.b16 %v963, %v959
    %v1332 = vpack.c.b16 %v964, %v960
    %v1333 = vpack.c.b16 %v969, %v965
    %v1334 = vpack.c.b16 %v970, %v966
    %v1335 = vpack.c.b16 %v971, %v967
    %v1336 = vpack.c.b16 %v972, %v968
    %v1337 = vpack.c.b16 %v977, %v973
    %v1338 = vpack.c.b16 %v978, %v974
    %v1339 = vpack.c.b16 %v979, %v975
    %v1340 = vpack.c.b16 %v980, %v976
    %v1341 = vpack.c.b16 %v985, %v981
    %v1342 = vpack.c.b16 %v986, %v982
    %v1343 = vpack.c.b16 %v987, %v983
    %v1344 = vpack.c.b16 %v988, %v984
    %v1345 = vpack.c.b16 %v993, %v989
    %v1346 = vpack.c.b16 %v994, %v990
    %v1347 = vpack.c.b16 %v995, %v991
    %v1348 = vpack.c.b16 %v996, %v992
    %v1349 = vpack.c.b16 %v1001, %v997
    %v1350 = vpack.c.b16 %v1002, %v998
    %v1351 = vpack.c.b16 %v1003, %v999
    %v1352 = vpack.c.b16 %v1004, %v1000
    %v1353 = vpack.c.b16 %v1009, %v1005
    %v1354 = vpack.c.b16 %v1010, %v1006
    %v1355 = vpack.c.b16 %v1011, %v1007
    %v1356 = vpack.c.b16 %v1012, %v1008
    %v1357 = vpack.c.b16 %v1017, %v1013
    %v1358 = vpack.c.b16 %v1018, %v1014
    %v1359 = vpack.c.b16 %v1019, %v1015
    %v1360 = vpack.c.b16 %v1020, %v1016
    %v1361 = vpack.c.b16 %v1025, %v1021
    %v1362 = vpack.c.b16 %v1026, %v1022
    %v1363 = vpack.c.b16 %v1027, %v1023
    %v1364 = vpack.c.b16 %v1028, %v1024
    %v1365 = vpack.c.b16 %v1033, %v1029
    %v1366 = vpack.c.b16 %v1034, %v1030
    %v1367 = vpack.c.b16 %v1035, %v1031
    %v1368 = vpack.c.b16 %v1036, %v1032
    %v1369 = vpack.c.b16 %v1041, %v1037
    %v1370 = vpack.c.b16 %v1042, %v1038
    %v1371 = vpack.c.b16 %v1043, %v1039
    %v1372 = vpack.c.b16 %v1044, %v1040
    %v1373 = vpack.c.b16 %v1049, %v1045
    %v1374 = vpack.c.b16 %v1050, %v1046
    %v1375 = vpack.c.b16 %v1051, %v1047
    %v1376 = vpack.c.b16 %v1052, %v1048
    %v1377 = vpack.c.b16 %v1057, %v1053
    %v1378 = vpack.c.b16 %v1058, %v1054
    %v1379 = vpack.c.b16 %v1059, %v1055
    %v1380 = vpack.c.b16 %v1060, %v1056
    %v1381 = vpack.c.b16 %v1065, %v1061
    %v1382 = vpack.c.b16 %v1066, %v1062
    %v1383 = vpack.c.b16 %v1067, %v1063
    %v1384 = vpack.c.b16 %v1068, %v1064
    %v1385 = vpack.c.b16 %v1073, %v1069
    %v1386 = vpack.c.b16 %v1074, %v1070
    %v1387 = vpack.c.b16 %v1075, %v1071
    %v1388 = vpack.c.b16 %v1076, %v1072
    %v1389 = vpack.c.b16 %v1081, %v1077
    %v1390 = vpack.c.b16 %v1082, %v1078
    %v1391 = vpack.c.b16 %v1083, %v1079
    %v1392 = vpack.c.b16 %v1084, %v1080
    %v1393 = vpack.c.b16 %v1089, %v1085
    %v1394 = vpack.c.b16 %v1090, %v1086
    %v1395 = vpack.c.b16 %v1091, %v1087
    %v1396 = vpack.c.b16 %v1092, %v1088
    %v1397 = vpack.c.b16 %v1097, %v1093
    %v1398 = vpack.c.b16 %v1098, %v1094
    %v1399 = vpack.c.b16 %v1099, %v1095
    %v1400 = vpack.c.b16 %v1100, %v1096
    %v1401 = vpack.c.b16 %v1105, %v1101
    %v1402 = vpack.c.b16 %v1106, %v1102
    %v1403 = vpack.c.b16 %v1107, %v1103
    %v1404 = vpack.c.b16 %v1108, %v1104
    %v1405 = vpack.c.b16 %v1113, %v1109
    %v1406 = vpack.c.b16 %v1114, %v1110
    %v1407 = vpack.c.b16 %v1115, %v1111
    %v1408 = vpack.c.b16 %v1116, %v1112
    %v1409 = vpack.c.b16 %v1121, %v1117
    %v1410 = vpack.c.b16 %v1122, %v1118
    %v1411 = vpack.c.b16 %v1123, %v1119
    %v1412 = vpack.c.b16 %v1124, %v1120
    %v1413 = vpack.c.b16 %v1129, %v1125
    %v1414 = vpack.c.b16 %v1130, %v1126
    %v1415 = vpack.c.b16 %v1131, %v1127
    %v1416 = vpack.c.b16 %v1132, %v1128
    %v1417 = vpack.c.b16 %v1137, %v1133
    %v1418 = vpack.c.b16 %v1138, %v1134
    %v1419 = vpack.c.b16 %v1139, %v1135
    %v1420 = vpack.c.b16 %v1140, %v1136
    %v1421 = vpack.c.b16 %v1145, %v1141
    %v1422 = vpack.c.b16 %v1146, %v1142
    %v1423 = vpack.c.b16 %v1147, %v1143
    %v1424 = vpack.c.b16 %v1148, %v1144
    %v1425 = vpack.c.b16 %v1153, %v1149
    %v1426 = vpack.c.b16 %v1154, %v1150
    %v1427 = vpack.c.b16 %v1155, %v1151
    %v1428 = vpack.c.b16 %v1156, %v1152
    %v1429 = vpack.c.b16 %v1161, %v1157
    %v1430 = vpack.c.b16 %v1162, %v1158
    %v1431 = vpack.c.b16 %v1163, %v1159
    %v1432 = vpack.c.b16 %v1164, %v1160
    %v1433 = vpack.c.b16 %v1169, %v1165
    %v1434 = vpack.c.b16 %v1170, %v1166
    %v1435 = vpack.c.b16 %v1171, %v1167
    %v1436 = vpack.c.b16 %v1172, %v1168
    %v1437 = vpack.c.b16 %v1177, %v1173
    %v1438 = vpack.c.b16 %v1178, %v1174
    %v1439 = vpack.c.b16 %v1179, %v1175
    %v1440 = vpack.c.b16 %v1180, %v1176
    %v1441 = vpack.c.b16 %v1185, %v1181
    %v1442 = vpack.c.b16 %v1186, %v1182
    %v1443 = vpack.c.b16 %v1187, %v1183
    %v1444 = vpack.c.b16 %v1188, %v1184
    %1701 = vmatpush.bf16.msra.mxu0 %v1217
    %1702 = vmatpush.bf16.msra.mxu0 %v1213
    %1703 = vmatpush.bf16.msra.mxu0 %v1209
    %1704 = vmatpush.bf16.msra.mxu0 %v1205
    %1705 = vmatpush.bf16.msra.mxu0 %v1201
    %1706 = vmatpush.bf16.msra.mxu0 %v1197
    %1707 = vmatpush.bf16.msra.mxu0 %v1193
    %1708 = vmatpush.bf16.msra.mxu0 %v1189
    %1709 = vmatmul.bf16.gmra.mxu0 %v157
    %v1710 = vpop.f32.mrf.mxu0
    %v1711 = vadd.f32 0.0, %v1710
    %v1712 = vpop.f32.mrf.mxu0
    %1713 = vdwg.mxu0
    %1714 = vmatpush.bf16.msra.mxu0 %v1249
    %1715 = vmatpush.bf16.msra.mxu0 %v1245
    %1716 = vmatpush.bf16.msra.mxu0 %v1241
    %1717 = vmatpush.bf16.msra.mxu0 %v1237
    %1718 = vmatpush.bf16.msra.mxu0 %v1233
    %1719 = vmatpush.bf16.msra.mxu0 %v1229
    %1720 = vmatpush.bf16.msra.mxu0 %v1225
    %1721 = vmatpush.bf16.msra.mxu0 %v1221
    %1722 = vmatmul.bf16.gmra.mxu0 %v158
    %v1723 = vpop.f32.mrf.mxu0
    %v1724 = vadd.f32 %v1711, %v1723
    %v1725 = vpop.f32.mrf.mxu0
    %1726 = vdwg.mxu0
    %1727 = vmatpush.bf16.msra.mxu0 %v1281
    %1728 = vmatpush.bf16.msra.mxu0 %v1277
    %1729 = vmatpush.bf16.msra.mxu0 %v1273
    %1730 = vmatpush.bf16.msra.mxu0 %v1269
    %1731 = vmatpush.bf16.msra.mxu0 %v1265
    %1732 = vmatpush.bf16.msra.mxu0 %v1261
    %1733 = vmatpush.bf16.msra.mxu0 %v1257
    %1734 = vmatpush.bf16.msra.mxu0 %v1253
    %1735 = vmatmul.bf16.gmra.mxu0 %v159
    %v1736 = vpop.f32.mrf.mxu0
    %v1737 = vadd.f32 %v1724, %v1736
    %v1738 = vpop.f32.mrf.mxu0
    %1739 = vdwg.mxu0
    %1740 = vmatpush.bf16.msra.mxu0 %v1313
    %1741 = vmatpush.bf16.msra.mxu0 %v1309
    %1742 = vmatpush.bf16.msra.mxu0 %v1305
    %1743 = vmatpush.bf16.msra.mxu0 %v1301
    %1744 = vmatpush.bf16.msra.mxu0 %v1297
    %1745 = vmatpush.bf16.msra.mxu0 %v1293
    %1746 = vmatpush.bf16.msra.mxu0 %v1289
    %1747 = vmatpush.bf16.msra.mxu0 %v1285
    %1748 = vmatmul.bf16.gmra.mxu0 %v160
    %v1749 = vpop.f32.mrf.mxu0
    %v1750 = vadd.f32 %v1737, %v1749
    %v1751 = vpop.f32.mrf.mxu0
    %1752 = vdwg.mxu0
    %1753 = vmatpush.bf16.msra.mxu0 %v1345
    %1754 = vmatpush.bf16.msra.mxu0 %v1341
    %1755 = vmatpush.bf16.msra.mxu0 %v1337
    %1756 = vmatpush.bf16.msra.mxu0 %v1333
    %1757 = vmatpush.bf16.msra.mxu0 %v1329
    %1758 = vmatpush.bf16.msra.mxu0 %v1325
    %1759 = vmatpush.bf16.msra.mxu0 %v1321
    %1760 = vmatpush.bf16.msra.mxu0 %v1317
    %1761 = vmatmul.bf16.gmra.mxu0 %v161
    %v1762 = vpop.f32.mrf.mxu0
    %v1763 = vadd.f32 %v1750, %v1762
    %v1764 = vpop.f32.mrf.mxu0
    %1765 = vdwg.mxu0
    %1766 = vmatpush.bf16.msra.mxu0 %v1377
    %1767 = vmatpush.bf16.msra.mxu0 %v1373
    %1768 = vmatpush.bf16.msra.mxu0 %v1369
    %1769 = vmatpush.bf16.msra.mxu0 %v1365
    %1770 = vmatpush.bf16.msra.mxu0 %v1361
    %1771 = vmatpush.bf16.msra.mxu0 %v1357
    %1772 = vmatpush.bf16.msra.mxu0 %v1353
    %1773 = vmatpush.bf16.msra.mxu0 %v1349
    %1774 = vmatmul.bf16.gmra.mxu0 %v162
    %v1775 = vpop.f32.mrf.mxu0
    %v1776 = vadd.f32 %v1763, %v1775
    %v1777 = vpop.f32.mrf.mxu0
    %1778 = vdwg.mxu0
    %1779 = vmatpush.bf16.msra.mxu0 %v1409
    %1780 = vmatpush.bf16.msra.mxu0 %v1405
    %1781 = vmatpush.bf16.msra.mxu0 %v1401
    %1782 = vmatpush.bf16.msra.mxu0 %v1397
    %1783 = vmatpush.bf16.msra.mxu0 %v1393
    %1784 = vmatpush.bf16.msra.mxu0 %v1389
    %1785 = vmatpush.bf16.msra.mxu0 %v1385
    %1786 = vmatpush.bf16.msra.mxu0 %v1381
    %1787 = vmatmul.bf16.gmra.mxu0 %v163
    %v1788 = vpop.f32.mrf.mxu0
    %v1789 = vadd.f32 %v1776, %v1788
    %v1790 = vpop.f32.mrf.mxu0
    %1791 = vdwg.mxu0
    %1792 = vmatpush.bf16.msra.mxu0 %v1441
    %1793 = vmatpush.bf16.msra.mxu0 %v1437
    %1794 = vmatpush.bf16.msra.mxu0 %v1433
    %1795 = vmatpush.bf16.msra.mxu0 %v1429
    %1796 = vmatpush.bf16.msra.mxu0 %v1425
    %1797 = vmatpush.bf16.msra.mxu0 %v1421
    %1798 = vmatpush.bf16.msra.mxu0 %v1417
    %1799 = vmatpush.bf16.msra.mxu0 %v1413
    %1800 = vmatmul.bf16.gmra.mxu0 %v164
    %v1801 = vpop.f32.mrf.mxu0
    %v1802 = vadd.f32 %v1789, %v1801
    %v1803 = vpop.f32.mrf.mxu0
    %1804 = vdwg.mxu0
    %1805 = vmatpush.bf16.msra.mxu0 %v1218
    %1806 = vmatpush.bf16.msra.mxu0 %v1214
    %1807 = vmatpush.bf16.msra.mxu0 %v1210
    %1808 = vmatpush.bf16.msra.mxu0 %v1206
    %1809 = vmatpush.bf16.msra.mxu0 %v1202
    %1810 = vmatpush.bf16.msra.mxu0 %v1198
    %1811 = vmatpush.bf16.msra.mxu0 %v1194
    %1812 = vmatpush.bf16.msra.mxu0 %v1190
    %1813 = vmatmul.bf16.gmra.mxu0 %v157
    %v1814 = vpop.f32.mrf.mxu0
    %v1815 = vadd.f32 0.0, %v1814
    %v1816 = vpop.f32.mrf.mxu0
    %1817 = vdwg.mxu0
    %1818 = vmatpush.bf16.msra.mxu0 %v1250
    %1819 = vmatpush.bf16.msra.mxu0 %v1246
    %1820 = vmatpush.bf16.msra.mxu0 %v1242
    %1821 = vmatpush.bf16.msra.mxu0 %v1238
    %1822 = vmatpush.bf16.msra.mxu0 %v1234
    %1823 = vmatpush.bf16.msra.mxu0 %v1230
    %1824 = vmatpush.bf16.msra.mxu0 %v1226
    %1825 = vmatpush.bf16.msra.mxu0 %v1222
    %1826 = vmatmul.bf16.gmra.mxu0 %v158
    %v1827 = vpop.f32.mrf.mxu0
    %v1828 = vadd.f32 %v1815, %v1827
    %v1829 = vpop.f32.mrf.mxu0
    %1830 = vdwg.mxu0
    %1831 = vmatpush.bf16.msra.mxu0 %v1282
    %1832 = vmatpush.bf16.msra.mxu0 %v1278
    %1833 = vmatpush.bf16.msra.mxu0 %v1274
    %1834 = vmatpush.bf16.msra.mxu0 %v1270
    %1835 = vmatpush.bf16.msra.mxu0 %v1266
    %1836 = vmatpush.bf16.msra.mxu0 %v1262
    %1837 = vmatpush.bf16.msra.mxu0 %v1258
    %1838 = vmatpush.bf16.msra.mxu0 %v1254
    %1839 = vmatmul.bf16.gmra.mxu0 %v159
    %v1840 = vpop.f32.mrf.mxu0
    %v1841 = vadd.f32 %v1828, %v1840
    %v1842 = vpop.f32.mrf.mxu0
    %1843 = vdwg.mxu0
    %1844 = vmatpush.bf16.msra.mxu0 %v1314
    %1845 = vmatpush.bf16.msra.mxu0 %v1310
    %1846 = vmatpush.bf16.msra.mxu0 %v1306
    %1847 = vmatpush.bf16.msra.mxu0 %v1302
    %1848 = vmatpush.bf16.msra.mxu0 %v1298
    %1849 = vmatpush.bf16.msra.mxu0 %v1294
    %1850 = vmatpush.bf16.msra.mxu0 %v1290
    %1851 = vmatpush.bf16.msra.mxu0 %v1286
    %1852 = vmatmul.bf16.gmra.mxu0 %v160
    %v1853 = vpop.f32.mrf.mxu0
    %v1854 = vadd.f32 %v1841, %v1853
    %v1855 = vpop.f32.mrf.mxu0
    %1856 = vdwg.mxu0
    %1857 = vmatpush.bf16.msra.mxu0 %v1346
    %1858 = vmatpush.bf16.msra.mxu0 %v1342
    %1859 = vmatpush.bf16.msra.mxu0 %v1338
    %1860 = vmatpush.bf16.msra.mxu0 %v1334
    %1861 = vmatpush.bf16.msra.mxu0 %v1330
    %1862 = vmatpush.bf16.msra.mxu0 %v1326
    %1863 = vmatpush.bf16.msra.mxu0 %v1322
    %1864 = vmatpush.bf16.msra.mxu0 %v1318
    %1865 = vmatmul.bf16.gmra.mxu0 %v161
    %v1866 = vpop.f32.mrf.mxu0
    %v1867 = vadd.f32 %v1854, %v1866
    %v1868 = vpop.f32.mrf.mxu0
    %1869 = vdwg.mxu0
    %1870 = vmatpush.bf16.msra.mxu0 %v1378
    %1871 = vmatpush.bf16.msra.mxu0 %v1374
    %1872 = vmatpush.bf16.msra.mxu0 %v1370
    %1873 = vmatpush.bf16.msra.mxu0 %v1366
    %1874 = vmatpush.bf16.msra.mxu0 %v1362
    %1875 = vmatpush.bf16.msra.mxu0 %v1358
    %1876 = vmatpush.bf16.msra.mxu0 %v1354
    %1877 = vmatpush.bf16.msra.mxu0 %v1350
    %1878 = vmatmul.bf16.gmra.mxu0 %v162
    %v1879 = vpop.f32.mrf.mxu0
    %v1880 = vadd.f32 %v1867, %v1879
    %v1881 = vpop.f32.mrf.mxu0
    %1882 = vdwg.mxu0
    %1883 = vmatpush.bf16.msra.mxu0 %v1410
    %1884 = vmatpush.bf16.msra.mxu0 %v1406
    %1885 = vmatpush.bf16.msra.mxu0 %v1402
    %1886 = vmatpush.bf16.msra.mxu0 %v1398
    %1887 = vmatpush.bf16.msra.mxu0 %v1394
    %1888 = vmatpush.bf16.msra.mxu0 %v1390
    %1889 = vmatpush.bf16.msra.mxu0 %v1386
    %1890 = vmatpush.bf16.msra.mxu0 %v1382
    %1891 = vmatmul.bf16.gmra.mxu0 %v163
    %v1892 = vpop.f32.mrf.mxu0
    %v1893 = vadd.f32 %v1880, %v1892
    %v1894 = vpop.f32.mrf.mxu0
    %1895 = vdwg.mxu0
    %1896 = vmatpush.bf16.msra.mxu0 %v1442
    %1897 = vmatpush.bf16.msra.mxu0 %v1438
    %1898 = vmatpush.bf16.msra.mxu0 %v1434
    %1899 = vmatpush.bf16.msra.mxu0 %v1430
    %1900 = vmatpush.bf16.msra.mxu0 %v1426
    %1901 = vmatpush.bf16.msra.mxu0 %v1422
    %1902 = vmatpush.bf16.msra.mxu0 %v1418
    %1903 = vmatpush.bf16.msra.mxu0 %v1414
    %1904 = vmatmul.bf16.gmra.mxu0 %v164
    %v1905 = vpop.f32.mrf.mxu0
    %v1906 = vadd.f32 %v1893, %v1905
    %v1907 = vpop.f32.mrf.mxu0
    %1908 = vdwg.mxu0
    %1909 = vmatpush.bf16.msra.mxu0 %v1219
    %1910 = vmatpush.bf16.msra.mxu0 %v1215
    %1911 = vmatpush.bf16.msra.mxu0 %v1211
    %1912 = vmatpush.bf16.msra.mxu0 %v1207
    %1913 = vmatpush.bf16.msra.mxu0 %v1203
    %1914 = vmatpush.bf16.msra.mxu0 %v1199
    %1915 = vmatpush.bf16.msra.mxu0 %v1195
    %1916 = vmatpush.bf16.msra.mxu0 %v1191
    %1917 = vmatmul.bf16.gmra.mxu0 %v157
    %v1918 = vpop.f32.mrf.mxu0
    %v1919 = vadd.f32 0.0, %v1918
    %v1920 = vpop.f32.mrf.mxu0
    %1921 = vdwg.mxu0
    %1922 = vmatpush.bf16.msra.mxu0 %v1251
    %1923 = vmatpush.bf16.msra.mxu0 %v1247
    %1924 = vmatpush.bf16.msra.mxu0 %v1243
    %1925 = vmatpush.bf16.msra.mxu0 %v1239
    %1926 = vmatpush.bf16.msra.mxu0 %v1235
    %1927 = vmatpush.bf16.msra.mxu0 %v1231
    %1928 = vmatpush.bf16.msra.mxu0 %v1227
    %1929 = vmatpush.bf16.msra.mxu0 %v1223
    %1930 = vmatmul.bf16.gmra.mxu0 %v158
    %v1931 = vpop.f32.mrf.mxu0
    %v1932 = vadd.f32 %v1919, %v1931
    %v1933 = vpop.f32.mrf.mxu0
    %1934 = vdwg.mxu0
    %1935 = vmatpush.bf16.msra.mxu0 %v1283
    %1936 = vmatpush.bf16.msra.mxu0 %v1279
    %1937 = vmatpush.bf16.msra.mxu0 %v1275
    %1938 = vmatpush.bf16.msra.mxu0 %v1271
    %1939 = vmatpush.bf16.msra.mxu0 %v1267
    %1940 = vmatpush.bf16.msra.mxu0 %v1263
    %1941 = vmatpush.bf16.msra.mxu0 %v1259
    %1942 = vmatpush.bf16.msra.mxu0 %v1255
    %1943 = vmatmul.bf16.gmra.mxu0 %v159
    %v1944 = vpop.f32.mrf.mxu0
    %v1945 = vadd.f32 %v1932, %v1944
    %v1946 = vpop.f32.mrf.mxu0
    %1947 = vdwg.mxu0
    %1948 = vmatpush.bf16.msra.mxu0 %v1315
    %1949 = vmatpush.bf16.msra.mxu0 %v1311
    %1950 = vmatpush.bf16.msra.mxu0 %v1307
    %1951 = vmatpush.bf16.msra.mxu0 %v1303
    %1952 = vmatpush.bf16.msra.mxu0 %v1299
    %1953 = vmatpush.bf16.msra.mxu0 %v1295
    %1954 = vmatpush.bf16.msra.mxu0 %v1291
    %1955 = vmatpush.bf16.msra.mxu0 %v1287
    %1956 = vmatmul.bf16.gmra.mxu0 %v160
    %v1957 = vpop.f32.mrf.mxu0
    %v1958 = vadd.f32 %v1945, %v1957
    %v1959 = vpop.f32.mrf.mxu0
    %1960 = vdwg.mxu0
    %1961 = vmatpush.bf16.msra.mxu0 %v1347
    %1962 = vmatpush.bf16.msra.mxu0 %v1343
    %1963 = vmatpush.bf16.msra.mxu0 %v1339
    %1964 = vmatpush.bf16.msra.mxu0 %v1335
    %1965 = vmatpush.bf16.msra.mxu0 %v1331
    %1966 = vmatpush.bf16.msra.mxu0 %v1327
    %1967 = vmatpush.bf16.msra.mxu0 %v1323
    %1968 = vmatpush.bf16.msra.mxu0 %v1319
    %1969 = vmatmul.bf16.gmra.mxu0 %v161
    %v1970 = vpop.f32.mrf.mxu0
    %v1971 = vadd.f32 %v1958, %v1970
    %v1972 = vpop.f32.mrf.mxu0
    %1973 = vdwg.mxu0
    %1974 = vmatpush.bf16.msra.mxu0 %v1379
    %1975 = vmatpush.bf16.msra.mxu0 %v1375
    %1976 = vmatpush.bf16.msra.mxu0 %v1371
    %1977 = vmatpush.bf16.msra.mxu0 %v1367
    %1978 = vmatpush.bf16.msra.mxu0 %v1363
    %1979 = vmatpush.bf16.msra.mxu0 %v1359
    %1980 = vmatpush.bf16.msra.mxu0 %v1355
    %1981 = vmatpush.bf16.msra.mxu0 %v1351
    %1982 = vmatmul.bf16.gmra.mxu0 %v162
    %v1983 = vpop.f32.mrf.mxu0
    %v1984 = vadd.f32 %v1971, %v1983
    %v1985 = vpop.f32.mrf.mxu0
    %1986 = vdwg.mxu0
    %1987 = vmatpush.bf16.msra.mxu0 %v1411
    %1988 = vmatpush.bf16.msra.mxu0 %v1407
    %1989 = vmatpush.bf16.msra.mxu0 %v1403
    %1990 = vmatpush.bf16.msra.mxu0 %v1399
    %1991 = vmatpush.bf16.msra.mxu0 %v1395
    %1992 = vmatpush.bf16.msra.mxu0 %v1391
    %1993 = vmatpush.bf16.msra.mxu0 %v1387
    %1994 = vmatpush.bf16.msra.mxu0 %v1383
    %1995 = vmatmul.bf16.gmra.mxu0 %v163
    %v1996 = vpop.f32.mrf.mxu0
    %v1997 = vadd.f32 %v1984, %v1996
    %v1998 = vpop.f32.mrf.mxu0
    %1999 = vdwg.mxu0
    %2000 = vmatpush.bf16.msra.mxu0 %v1443
    %2001 = vmatpush.bf16.msra.mxu0 %v1439
    %2002 = vmatpush.bf16.msra.mxu0 %v1435
    %2003 = vmatpush.bf16.msra.mxu0 %v1431
    %2004 = vmatpush.bf16.msra.mxu0 %v1427
    %2005 = vmatpush.bf16.msra.mxu0 %v1423
    %2006 = vmatpush.bf16.msra.mxu0 %v1419
    %2007 = vmatpush.bf16.msra.mxu0 %v1415
    %2008 = vmatmul.bf16.gmra.mxu0 %v164
    %v2009 = vpop.f32.mrf.mxu0
    %v2010 = vadd.f32 %v1997, %v2009
    %v2011 = vpop.f32.mrf.mxu0
    %2012 = vdwg.mxu0
    %2013 = vmatpush.bf16.msra.mxu0 %v1220
    %2014 = vmatpush.bf16.msra.mxu0 %v1216
    %2015 = vmatpush.bf16.msra.mxu0 %v1212
    %2016 = vmatpush.bf16.msra.mxu0 %v1208
    %2017 = vmatpush.bf16.msra.mxu0 %v1204
    %2018 = vmatpush.bf16.msra.mxu0 %v1200
    %2019 = vmatpush.bf16.msra.mxu0 %v1196
    %2020 = vmatpush.bf16.msra.mxu0 %v1192
    %2021 = vmatmul.bf16.gmra.mxu0 %v157
    %v2022 = vpop.f32.mrf.mxu0
    %v2023 = vadd.f32 0.0, %v2022
    %v2024 = vpop.f32.mrf.mxu0
    %2025 = vdwg.mxu0
    %2026 = vmatpush.bf16.msra.mxu0 %v1252
    %2027 = vmatpush.bf16.msra.mxu0 %v1248
    %2028 = vmatpush.bf16.msra.mxu0 %v1244
    %2029 = vmatpush.bf16.msra.mxu0 %v1240
    %2030 = vmatpush.bf16.msra.mxu0 %v1236
    %2031 = vmatpush.bf16.msra.mxu0 %v1232
    %2032 = vmatpush.bf16.msra.mxu0 %v1228
    %2033 = vmatpush.bf16.msra.mxu0 %v1224
    %2034 = vmatmul.bf16.gmra.mxu0 %v158
    %v2035 = vpop.f32.mrf.mxu0
    %v2036 = vadd.f32 %v2023, %v2035
    %v2037 = vpop.f32.mrf.mxu0
    %2038 = vdwg.mxu0
    %2039 = vmatpush.bf16.msra.mxu0 %v1284
    %2040 = vmatpush.bf16.msra.mxu0 %v1280
    %2041 = vmatpush.bf16.msra.mxu0 %v1276
    %2042 = vmatpush.bf16.msra.mxu0 %v1272
    %2043 = vmatpush.bf16.msra.mxu0 %v1268
    %2044 = vmatpush.bf16.msra.mxu0 %v1264
    %2045 = vmatpush.bf16.msra.mxu0 %v1260
    %2046 = vmatpush.bf16.msra.mxu0 %v1256
    %2047 = vmatmul.bf16.gmra.mxu0 %v159
    %v2048 = vpop.f32.mrf.mxu0
    %v2049 = vadd.f32 %v2036, %v2048
    %v2050 = vpop.f32.mrf.mxu0
    %2051 = vdwg.mxu0
    %2052 = vmatpush.bf16.msra.mxu0 %v1316
    %2053 = vmatpush.bf16.msra.mxu0 %v1312
    %2054 = vmatpush.bf16.msra.mxu0 %v1308
    %2055 = vmatpush.bf16.msra.mxu0 %v1304
    %2056 = vmatpush.bf16.msra.mxu0 %v1300
    %2057 = vmatpush.bf16.msra.mxu0 %v1296
    %2058 = vmatpush.bf16.msra.mxu0 %v1292
    %2059 = vmatpush.bf16.msra.mxu0 %v1288
    %2060 = vmatmul.bf16.gmra.mxu0 %v160
    %v2061 = vpop.f32.mrf.mxu0
    %v2062 = vadd.f32 %v2049, %v2061
    %v2063 = vpop.f32.mrf.mxu0
    %2064 = vdwg.mxu0
    %2065 = vmatpush.bf16.msra.mxu0 %v1348
    %2066 = vmatpush.bf16.msra.mxu0 %v1344
    %2067 = vmatpush.bf16.msra.mxu0 %v1340
    %2068 = vmatpush.bf16.msra.mxu0 %v1336
    %2069 = vmatpush.bf16.msra.mxu0 %v1332
    %2070 = vmatpush.bf16.msra.mxu0 %v1328
    %2071 = vmatpush.bf16.msra.mxu0 %v1324
    %2072 = vmatpush.bf16.msra.mxu0 %v1320
    %2073 = vmatmul.bf16.gmra.mxu0 %v161
    %v2074 = vpop.f32.mrf.mxu0
    %v2075 = vadd.f32 %v2062, %v2074
    %v2076 = vpop.f32.mrf.mxu0
    %2077 = vdwg.mxu0
    %2078 = vmatpush.bf16.msra.mxu0 %v1380
    %2079 = vmatpush.bf16.msra.mxu0 %v1376
    %2080 = vmatpush.bf16.msra.mxu0 %v1372
    %2081 = vmatpush.bf16.msra.mxu0 %v1368
    %2082 = vmatpush.bf16.msra.mxu0 %v1364
    %2083 = vmatpush.bf16.msra.mxu0 %v1360
    %2084 = vmatpush.bf16.msra.mxu0 %v1356
    %2085 = vmatpush.bf16.msra.mxu0 %v1352
    %2086 = vmatmul.bf16.gmra.mxu0 %v162
    %v2087 = vpop.f32.mrf.mxu0
    %v2088 = vadd.f32 %v2075, %v2087
    %v2089 = vpop.f32.mrf.mxu0
    %2090 = vdwg.mxu0
    %2091 = vmatpush.bf16.msra.mxu0 %v1412
    %2092 = vmatpush.bf16.msra.mxu0 %v1408
    %2093 = vmatpush.bf16.msra.mxu0 %v1404
    %2094 = vmatpush.bf16.msra.mxu0 %v1400
    %2095 = vmatpush.bf16.msra.mxu0 %v1396
    %2096 = vmatpush.bf16.msra.mxu0 %v1392
    %2097 = vmatpush.bf16.msra.mxu0 %v1388
    %2098 = vmatpush.bf16.msra.mxu0 %v1384
    %2099 = vmatmul.bf16.gmra.mxu0 %v163
    %v2100 = vpop.f32.mrf.mxu0
    %v2101 = vadd.f32 %v2088, %v2100
    %v2102 = vpop.f32.mrf.mxu0
    %2103 = vdwg.mxu0
    %2104 = vmatpush.bf16.msra.mxu0 %v1444
    %2105 = vmatpush.bf16.msra.mxu0 %v1440
    %2106 = vmatpush.bf16.msra.mxu0 %v1436
    %2107 = vmatpush.bf16.msra.mxu0 %v1432
    %2108 = vmatpush.bf16.msra.mxu0 %v1428
    %2109 = vmatpush.bf16.msra.mxu0 %v1424
    %2110 = vmatpush.bf16.msra.mxu0 %v1420
    %2111 = vmatpush.bf16.msra.mxu0 %v1416
    %2112 = vmatmul.bf16.gmra.mxu0 %v164
    %v2113 = vpop.f32.mrf.mxu0
    %v2114 = vadd.f32 %v2101, %v2113
    %v2115 = vpop.f32.mrf.mxu0
    %2116 = vdwg.mxu0
    %v2117 = vadd.f32 %v145, %v1802
    %v2118 = vadd.f32 %v146, %v1906
    %v2119 = vadd.f32 %v147, %v2010
    %v2120 = vadd.f32 %v148, %v2114
    %2121 = vst [vmem:[#allocation2] sm:$0xff] %v2117
    %2122 = vst [vmem:[#allocation2 + $0x8] sm:$0xff] %v2118
    %2123 = vst [vmem:[#allocation2 + $0x10] sm:$0xff] %v2119
    %2124 = vst [vmem:[#allocation2 + $0x18] sm:$0xff] %v2120
    // Predicated region
    $region68: #{tpu_custom_call.1} parent=1 // pred_check
      %p2125 = pneg %p47
    $region69: #{tpu_custom_call.1} parent=1 // pred_check_branch
      %2127 = sbr.rel (%p2125) target = $region71
    $region70: #{tpu_custom_call.1} parent=1 // pred_region
      %s2128 = smul.u32 2, 1
      %s2129 = smul.u32 %s2128, 4
      %s2130 = sshll.u32 %s2129, 4
      %2131 = dma.done [#allocation8], %s2130
      %s2132 = scalar_lea.sflag [#allocation8], 1
      %s2133 = smul.u32 4, 64
      %s2134 = smul.u32 %s2133, 2
      %s2135 = sshll.u32 %s2134, 4
      %2136 = dma.done %s2132, %s2135
      %s2137 = scalar_lea.sflag [#allocation8], 2
      %s2138 = smul.u32 %s2128, 2
      %s2139 = sshll.u32 %s2138, 4
      %2140 = dma.done %s2137, %s2139
      %s2141 = scalar_lea.sflag [#allocation8], 3
      %s2142 = smul.u32 256, 1
      %s2143 = sshll.u32 %s2142, 4
      %2144 = dma.done %s2141, %s2143
      %s2145 = scalar_lea.sflag [#allocation8], 4
      %s2146 = smul.u32 1, 1
      %s2147 = sshll.u32 %s2146, 4
      %2148 = dma.done %s2145, %s2147
      %v2149 = vld [vmem:[#allocation2] sm:$0xff]
      %v2150 = vld [vmem:[#allocation2 + $0x8] sm:$0xff]
      %v2151 = vld [vmem:[#allocation2 + $0x10] sm:$0xff]
      %v2152 = vld [vmem:[#allocation2 + $0x18] sm:$0xff]
      %v2153 = vld [vmem:[#allocation3] sm:$0xff]
      %v2154 = vrot.slane %v2149, 4
      %v2155 = vadd.f32 %v2149, %v2154
      %v2156 = vrot.slane %v2155, 2
      %v2157 = vadd.f32 %v2155, %v2156
      %v2158 = vrot.slane %v2157, 1
      %v2159 = vadd.f32 %v2157, %v2158
      %v2160 = vrot.slane %v2150, 4
      %v2161 = vadd.f32 %v2150, %v2160
      %v2162 = vrot.slane %v2161, 2
      %v2163 = vadd.f32 %v2161, %v2162
      %v2164 = vrot.slane %v2163, 1
      %v2165 = vadd.f32 %v2163, %v2164
      %v2166 = vrot.slane %v2151, 4
      %v2167 = vadd.f32 %v2151, %v2166
      %v2168 = vrot.slane %v2167, 2
      %v2169 = vadd.f32 %v2167, %v2168
      %v2170 = vrot.slane %v2169, 1
      %v2171 = vadd.f32 %v2169, %v2170
      %v2172 = vrot.slane %v2152, 4
      %v2173 = vadd.f32 %v2152, %v2172
      %v2174 = vrot.slane %v2173, 2
      %v2175 = vadd.f32 %v2173, %v2174
      %v2176 = vrot.slane %v2175, 1
      %v2177 = vadd.f32 %v2175, %v2176
      %v2178 = vrcp.pop 8.0
      %v2179 = vmul.f32 8.0, %v2178
      %v2180 = vsub.f32 1.0, %v2179
      %v2181 = vmul.f32 %v2178, %v2180
      %v2182 = vadd.f32 %v2178, %v2181
      %vm2183 = vweird.f32 %v2178
      %v2184 = vsel %vm2183, %v2178, %v2182
      %v2185 = vmul.f32 %v2159, %v2184
      %v2186 = vmul.f32 %v2165, %v2184
      %v2187 = vmul.f32 %v2171, %v2184
      %v2188 = vmul.f32 %v2177, %v2184
      %v2189 = vsub.f32 %v2149, %v2185
      %v2190 = vsub.f32 %v2150, %v2186
      %v2191 = vsub.f32 %v2151, %v2187
      %v2192 = vsub.f32 %v2152, %v2188
      %v2193 = vmul.f32 %v2189, %v2189
      %v2194 = vmul.f32 %v2190, %v2190
      %v2195 = vmul.f32 %v2191, %v2191
      %v2196 = vmul.f32 %v2192, %v2192
      %v2197 = vrot.slane %v2193, 4
      %v2198 = vadd.f32 %v2193, %v2197
      %v2199 = vrot.slane %v2198, 2
      %v2200 = vadd.f32 %v2198, %v2199
      %v2201 = vrot.slane %v2200, 1
      %v2202 = vadd.f32 %v2200, %v2201
      %v2203 = vrot.slane %v2194, 4
      %v2204 = vadd.f32 %v2194, %v2203
      %v2205 = vrot.slane %v2204, 2
      %v2206 = vadd.f32 %v2204, %v2205
      %v2207 = vrot.slane %v2206, 1
      %v2208 = vadd.f32 %v2206, %v2207
      %v2209 = vrot.slane %v2195, 4
      %v2210 = vadd.f32 %v2195, %v2209
      %v2211 = vrot.slane %v2210, 2
      %v2212 = vadd.f32 %v2210, %v2211
      %v2213 = vrot.slane %v2212, 1
      %v2214 = vadd.f32 %v2212, %v2213
      %v2215 = vrot.slane %v2196, 4
      %v2216 = vadd.f32 %v2196, %v2215
      %v2217 = vrot.slane %v2216, 2
      %v2218 = vadd.f32 %v2216, %v2217
      %v2219 = vrot.slane %v2218, 1
      %v2220 = vadd.f32 %v2218, %v2219
      %v2221 = vmul.f32 %v2202, %v2184
      %v2222 = vmul.f32 %v2208, %v2184
      %v2223 = vmul.f32 %v2214, %v2184
      %v2224 = vmul.f32 %v2220, %v2184
      %v2225 = vadd.f32 %v2221, 1e-05
      %v2226 = vadd.f32 %v2222, 1e-05
      %v2227 = vadd.f32 %v2223, 1e-05
      %v2228 = vadd.f32 %v2224, 1e-05
      %v2229 = vrsqrt.pop %v2225
      %v2230 = vmul.f32 %v2229, %v2225
      %v2231 = vmul.f32 %v2230, %v2229
      %v2232 = vmul.f32 0.5, %v2231
      %v2233 = vsub.f32 1.5, %v2232
      %v2234 = vmul.f32 %v2229, %v2233
      %vm2235 = vweird.f32 %v2225
      %vm2236 = vweird.f32 %v2229
      %vm2237 = vmor %vm2235, %vm2236
      %v2238 = vsel %vm2237, %v2229, %v2234
      %v2239 = vrsqrt.pop %v2226
      %v2240 = vmul.f32 %v2239, %v2226
      %v2241 = vmul.f32 %v2240, %v2239
      %v2242 = vmul.f32 0.5, %v2241
      %v2243 = vsub.f32 1.5, %v2242
      %v2244 = vmul.f32 %v2239, %v2243
      %vm2245 = vweird.f32 %v2226
      %vm2246 = vweird.f32 %v2239
      %vm2247 = vmor %vm2245, %vm2246
      %v2248 = vsel %vm2247, %v2239, %v2244
      %v2249 = vrsqrt.pop %v2227
      %v2250 = vmul.f32 %v2249, %v2227
      %v2251 = vmul.f32 %v2250, %v2249
      %v2252 = vmul.f32 0.5, %v2251
      %v2253 = vsub.f32 1.5, %v2252
      %v2254 = vmul.f32 %v2249, %v2253
      %vm2255 = vweird.f32 %v2227
      %vm2256 = vweird.f32 %v2249
      %vm2257 = vmor %vm2255, %vm2256
      %v2258 = vsel %vm2257, %v2249, %v2254
      %v2259 = vrsqrt.pop %v2228
      %v2260 = vmul.f32 %v2259, %v2228
      %v2261 = vmul.f32 %v2260, %v2259
      %v2262 = vmul.f32 0.5, %v2261
      %v2263 = vsub.f32 1.5, %v2262
      %v2264 = vmul.f32 %v2259, %v2263
      %vm2265 = vweird.f32 %v2228
      %vm2266 = vweird.f32 %v2259
      %vm2267 = vmor %vm2265, %vm2266
      %v2268 = vsel %vm2267, %v2259, %v2264
      %v2273 = vrot.slane %v2248, 6
      %v2274 = vrot.slane %v2258, 4
      %v2275 = vrot.slane %v2268, 2
      %vm2276 = vcmask 1041408
      %v2277 = vsel %vm2276, %v2238, %v2273
      %vm2278 = vcmask 1045508
      %v2279 = vsel %vm2278, %v2274, %v2275
      %vm2280 = vcmask 1043456
      %v2281 = vsel %vm2280, %v2277, %v2279
      %v2283 = vmul.f32 %v2153, %v2281
      %v2285 = vperm.slane %v2283, 0
      %v2286 = vperm.slane %v2283, 2
      %v2287 = vperm.slane %v2283, 4
      %v2288 = vperm.slane %v2283, 6
      %v2293 = vperm.slane %v2285, 0
      %v2294 = vperm.slane %v2286, 0
      %v2295 = vperm.slane %v2287, 0
      %v2296 = vperm.slane %v2288, 0
      %v2297 = vmul.f32 %v2189, %v2293
      %v2298 = vmul.f32 %v2190, %v2294
      %v2299 = vmul.f32 %v2191, %v2295
      %v2300 = vmul.f32 %v2192, %v2296
      %v2302 = vperm.slane %v2153, 1
      %v2303 = vperm.slane %v2153, 3
      %v2304 = vperm.slane %v2153, 5
      %v2305 = vperm.slane %v2153, 7
      %v2310 = vperm.slane %v2302, 1
      %v2311 = vperm.slane %v2303, 1
      %v2312 = vperm.slane %v2304, 1
      %v2313 = vperm.slane %v2305, 1
      %v2314 = vadd.f32 %v2297, %v2310
      %v2315 = vadd.f32 %v2298, %v2311
      %v2316 = vadd.f32 %v2299, %v2312
      %v2317 = vadd.f32 %v2300, %v2313
      %vm2318 = vcmp.gt.f32.partialorder %v2314, 0.0
      %vm2319 = vcmp.gt.f32.partialorder %v2315, 0.0
      %vm2320 = vcmp.gt.f32.partialorder %v2316, 0.0
      %vm2321 = vcmp.gt.f32.partialorder %v2317, 0.0
      %v2322 = vmul.f32 %v2314, 0.1
      %v2323 = vmul.f32 %v2315, 0.1
      %v2324 = vmul.f32 %v2316, 0.1
      %v2325 = vmul.f32 %v2317, 0.1
      %v2326 = vsel %vm2318, %v2314, %v2322
      %v2327 = vsel %vm2319, %v2315, %v2323
      %v2328 = vsel %vm2320, %v2316, %v2324
      %v2329 = vsel %vm2321, %v2317, %v2325
      %v2330 = vpack.c.bf16 %v2326, %v2326
      %v2331 = vpack.c.bf16 %v2327, %v2327
      %v2332 = vpack.c.bf16 %v2328, %v2328
      %v2333 = vpack.c.bf16 %v2329, %v2329
      %v2334 = vld [vmem:[#allocation4] sm:$0xff]
      %v2335 = vld [vmem:[#allocation4 + $0x8] sm:$0xff]
      %v2336 = vld [vmem:[#allocation4 + $0x10] sm:$0xff]
      %v2337 = vld [vmem:[#allocation4 + $0x18] sm:$0xff]
      %v2338 = vld [vmem:[#allocation4 + $0x20] sm:$0xff]
      %v2339 = vld [vmem:[#allocation4 + $0x28] sm:$0xff]
      %v2340 = vld [vmem:[#allocation4 + $0x30] sm:$0xff]
      %v2341 = vld [vmem:[#allocation4 + $0x38] sm:$0xff]
      %v2342 = vld [vmem:[#allocation4 + $0x40] sm:$0xff]
      %v2343 = vld [vmem:[#allocation4 + $0x48] sm:$0xff]
      %v2344 = vld [vmem:[#allocation4 + $0x50] sm:$0xff]
      %v2345 = vld [vmem:[#allocation4 + $0x58] sm:$0xff]
      %v2346 = vld [vmem:[#allocation4 + $0x60] sm:$0xff]
      %v2347 = vld [vmem:[#allocation4 + $0x68] sm:$0xff]
      %v2348 = vld [vmem:[#allocation4 + $0x70] sm:$0xff]
      %v2349 = vld [vmem:[#allocation4 + $0x78] sm:$0xff]
      %v2350 = vld [vmem:[#allocation4 + $0x80] sm:$0xff]
      %v2351 = vld [vmem:[#allocation4 + $0x88] sm:$0xff]
      %v2352 = vld [vmem:[#allocation4 + $0x90] sm:$0xff]
      %v2353 = vld [vmem:[#allocation4 + $0x98] sm:$0xff]
      %v2354 = vld [vmem:[#allocation4 + $0xa0] sm:$0xff]
      %v2355 = vld [vmem:[#allocation4 + $0xa8] sm:$0xff]
      %v2356 = vld [vmem:[#allocation4 + $0xb0] sm:$0xff]
      %v2357 = vld [vmem:[#allocation4 + $0xb8] sm:$0xff]
      %v2358 = vld [vmem:[#allocation4 + $0xc0] sm:$0xff]
      %v2359 = vld [vmem:[#allocation4 + $0xc8] sm:$0xff]
      %v2360 = vld [vmem:[#allocation4 + $0xd0] sm:$0xff]
      %v2361 = vld [vmem:[#allocation4 + $0xd8] sm:$0xff]
      %v2362 = vld [vmem:[#allocation4 + $0xe0] sm:$0xff]
      %v2363 = vld [vmem:[#allocation4 + $0xe8] sm:$0xff]
      %v2364 = vld [vmem:[#allocation4 + $0xf0] sm:$0xff]
      %v2365 = vld [vmem:[#allocation4 + $0xf8] sm:$0xff]
      %v2366 = vld [vmem:[#allocation4 + $0x100] sm:$0xff]
      %v2367 = vld [vmem:[#allocation4 + $0x108] sm:$0xff]
      %v2368 = vld [vmem:[#allocation4 + $0x110] sm:$0xff]
      %v2369 = vld [vmem:[#allocation4 + $0x118] sm:$0xff]
      %v2370 = vld [vmem:[#allocation4 + $0x120] sm:$0xff]
      %v2371 = vld [vmem:[#allocation4 + $0x128] sm:$0xff]
      %v2372 = vld [vmem:[#allocation4 + $0x130] sm:$0xff]
      %v2373 = vld [vmem:[#allocation4 + $0x138] sm:$0xff]
      %v2374 = vld [vmem:[#allocation4 + $0x140] sm:$0xff]
      %v2375 = vld [vmem:[#allocation4 + $0x148] sm:$0xff]
      %v2376 = vld [vmem:[#allocation4 + $0x150] sm:$0xff]
      %v2377 = vld [vmem:[#allocation4 + $0x158] sm:$0xff]
      %v2378 = vld [vmem:[#allocation4 + $0x160] sm:$0xff]
      %v2379 = vld [vmem:[#allocation4 + $0x168] sm:$0xff]
      %v2380 = vld [vmem:[#allocation4 + $0x170] sm:$0xff]
      %v2381 = vld [vmem:[#allocation4 + $0x178] sm:$0xff]
      %v2382 = vld [vmem:[#allocation4 + $0x180] sm:$0xff]
      %v2383 = vld [vmem:[#allocation4 + $0x188] sm:$0xff]
      %v2384 = vld [vmem:[#allocation4 + $0x190] sm:$0xff]
      %v2385 = vld [vmem:[#allocation4 + $0x198] sm:$0xff]
      %v2386 = vld [vmem:[#allocation4 + $0x1a0] sm:$0xff]
      %v2387 = vld [vmem:[#allocation4 + $0x1a8] sm:$0xff]
      %v2388 = vld [vmem:[#allocation4 + $0x1b0] sm:$0xff]
      %v2389 = vld [vmem:[#allocation4 + $0x1b8] sm:$0xff]
      %v2390 = vld [vmem:[#allocation4 + $0x1c0] sm:$0xff]
      %v2391 = vld [vmem:[#allocation4 + $0x1c8] sm:$0xff]
      %v2392 = vld [vmem:[#allocation4 + $0x1d0] sm:$0xff]
      %v2393 = vld [vmem:[#allocation4 + $0x1d8] sm:$0xff]
      %v2394 = vld [vmem:[#allocation4 + $0x1e0] sm:$0xff]
      %v2395 = vld [vmem:[#allocation4 + $0x1e8] sm:$0xff]
      %v2396 = vld [vmem:[#allocation4 + $0x1f0] sm:$0xff]
      %v2397 = vld [vmem:[#allocation4 + $0x1f8] sm:$0xff]
      %v2462 = vunpack.c.l.b16 %v2334
      %v2463 = vunpack.c.h.b16 %v2334
      %v2464 = vunpack.c.l.b16 %v2335
      %v2465 = vunpack.c.h.b16 %v2335
      %v2466 = vunpack.c.l.b16 %v2336
      %v2467 = vunpack.c.h.b16 %v2336
      %v2468 = vunpack.c.l.b16 %v2337
      %v2469 = vunpack.c.h.b16 %v2337
      %v2470 = vunpack.c.l.b16 %v2338
      %v2471 = vunpack.c.h.b16 %v2338
      %v2472 = vunpack.c.l.b16 %v2339
      %v2473 = vunpack.c.h.b16 %v2339
      %v2474 = vunpack.c.l.b16 %v2340
      %v2475 = vunpack.c.h.b16 %v2340
      %v2476 = vunpack.c.l.b16 %v2341
      %v2477 = vunpack.c.h.b16 %v2341
      %v2478 = vunpack.c.l.b16 %v2342
      %v2479 = vunpack.c.h.b16 %v2342
      %v2480 = vunpack.c.l.b16 %v2343
      %v2481 = vunpack.c.h.b16 %v2343
      %v2482 = vunpack.c.l.b16 %v2344
      %v2483 = vunpack.c.h.b16 %v2344
      %v2484 = vunpack.c.l.b16 %v2345
      %v2485 = vunpack.c.h.b16 %v2345
      %v2486 = vunpack.c.l.b16 %v2346
      %v2487 = vunpack.c.h.b16 %v2346
      %v2488 = vunpack.c.l.b16 %v2347
      %v2489 = vunpack.c.h.b16 %v2347
      %v2490 = vunpack.c.l.b16 %v2348
      %v2491 = vunpack.c.h.b16 %v2348
      %v2492 = vunpack.c.l.b16 %v2349
      %v2493 = vunpack.c.h.b16 %v2349
      %v2494 = vunpack.c.l.b16 %v2350
      %v2495 = vunpack.c.h.b16 %v2350
      %v2496 = vunpack.c.l.b16 %v2351
      %v2497 = vunpack.c.h.b16 %v2351
      %v2498 = vunpack.c.l.b16 %v2352
      %v2499 = vunpack.c.h.b16 %v2352
      %v2500 = vunpack.c.l.b16 %v2353
      %v2501 = vunpack.c.h.b16 %v2353
      %v2502 = vunpack.c.l.b16 %v2354
      %v2503 = vunpack.c.h.b16 %v2354
      %v2504 = vunpack.c.l.b16 %v2355
      %v2505 = vunpack.c.h.b16 %v2355
      %v2506 = vunpack.c.l.b16 %v2356
      %v2507 = vunpack.c.h.b16 %v2356
      %v2508 = vunpack.c.l.b16 %v2357
      %v2509 = vunpack.c.h.b16 %v2357
      %v2510 = vunpack.c.l.b16 %v2358
      %v2511 = vunpack.c.h.b16 %v2358
      %v2512 = vunpack.c.l.b16 %v2359
      %v2513 = vunpack.c.h.b16 %v2359
      %v2514 = vunpack.c.l.b16 %v2360
      %v2515 = vunpack.c.h.b16 %v2360
      %v2516 = vunpack.c.l.b16 %v2361
      %v2517 = vunpack.c.h.b16 %v2361
      %v2518 = vunpack.c.l.b16 %v2362
      %v2519 = vunpack.c.h.b16 %v2362
      %v2520 = vunpack.c.l.b16 %v2363
      %v2521 = vunpack.c.h.b16 %v2363
      %v2522 = vunpack.c.l.b16 %v2364
      %v2523 = vunpack.c.h.b16 %v2364
      %v2524 = vunpack.c.l.b16 %v2365
      %v2525 = vunpack.c.h.b16 %v2365
      %v2526 = vunpack.c.l.b16 %v2366
      %v2527 = vunpack.c.h.b16 %v2366
      %v2528 = vunpack.c.l.b16 %v2367
      %v2529 = vunpack.c.h.b16 %v2367
      %v2530 = vunpack.c.l.b16 %v2368
      %v2531 = vunpack.c.h.b16 %v2368
      %v2532 = vunpack.c.l.b16 %v2369
      %v2533 = vunpack.c.h.b16 %v2369
      %v2534 = vunpack.c.l.b16 %v2370
      %v2535 = vunpack.c.h.b16 %v2370
      %v2536 = vunpack.c.l.b16 %v2371
      %v2537 = vunpack.c.h.b16 %v2371
      %v2538 = vunpack.c.l.b16 %v2372
      %v2539 = vunpack.c.h.b16 %v2372
      %v2540 = vunpack.c.l.b16 %v2373
      %v2541 = vunpack.c.h.b16 %v2373
      %v2542 = vunpack.c.l.b16 %v2374
      %v2543 = vunpack.c.h.b16 %v2374
      %v2544 = vunpack.c.l.b16 %v2375
      %v2545 = vunpack.c.h.b16 %v2375
      %v2546 = vunpack.c.l.b16 %v2376
      %v2547 = vunpack.c.h.b16 %v2376
      %v2548 = vunpack.c.l.b16 %v2377
      %v2549 = vunpack.c.h.b16 %v2377
      %v2550 = vunpack.c.l.b16 %v2378
      %v2551 = vunpack.c.h.b16 %v2378
      %v2552 = vunpack.c.l.b16 %v2379
      %v2553 = vunpack.c.h.b16 %v2379
      %v2554 = vunpack.c.l.b16 %v2380
      %v2555 = vunpack.c.h.b16 %v2380
      %v2556 = vunpack.c.l.b16 %v2381
      %v2557 = vunpack.c.h.b16 %v2381
      %v2558 = vunpack.c.l.b16 %v2382
      %v2559 = vunpack.c.h.b16 %v2382
      %v2560 = vunpack.c.l.b16 %v2383
      %v2561 = vunpack.c.h.b16 %v2383
      %v2562 = vunpack.c.l.b16 %v2384
      %v2563 = vunpack.c.h.b16 %v2384
      %v2564 = vunpack.c.l.b16 %v2385
      %v2565 = vunpack.c.h.b16 %v2385
      %v2566 = vunpack.c.l.b16 %v2386
      %v2567 = vunpack.c.h.b16 %v2386
      %v2568 = vunpack.c.l.b16 %v2387
      %v2569 = vunpack.c.h.b16 %v2387
      %v2570 = vunpack.c.l.b16 %v2388
      %v2571 = vunpack.c.h.b16 %v2388
      %v2572 = vunpack.c.l.b16 %v2389
      %v2573 = vunpack.c.h.b16 %v2389
      %v2574 = vunpack.c.l.b16 %v2390
      %v2575 = vunpack.c.h.b16 %v2390
      %v2576 = vunpack.c.l.b16 %v2391
      %v2577 = vunpack.c.h.b16 %v2391
      %v2578 = vunpack.c.l.b16 %v2392
      %v2579 = vunpack.c.h.b16 %v2392
      %v2580 = vunpack.c.l.b16 %v2393
      %v2581 = vunpack.c.h.b16 %v2393
      %v2582 = vunpack.c.l.b16 %v2394
      %v2583 = vunpack.c.h.b16 %v2394
      %v2584 = vunpack.c.l.b16 %v2395
      %v2585 = vunpack.c.h.b16 %v2395
      %v2586 = vunpack.c.l.b16 %v2396
      %v2587 = vunpack.c.h.b16 %v2396
      %v2588 = vunpack.c.l.b16 %v2397
      %v2589 = vunpack.c.h.b16 %v2397
      %v2590 = vpack.c.b16 %v2464, %v2462
      %v2591 = vpack.c.b16 %v2465, %v2463
      %v2592 = vpack.c.b16 %v2468, %v2466
      %v2593 = vpack.c.b16 %v2469, %v2467
      %v2594 = vpack.c.b16 %v2472, %v2470
      %v2595 = vpack.c.b16 %v2473, %v2471
      %v2596 = vpack.c.b16 %v2476, %v2474
      %v2597 = vpack.c.b16 %v2477, %v2475
      %v2598 = vpack.c.b16 %v2480, %v2478
      %v2599 = vpack.c.b16 %v2481, %v2479
      %v2600 = vpack.c.b16 %v2484, %v2482
      %v2601 = vpack.c.b16 %v2485, %v2483
      %v2602 = vpack.c.b16 %v2488, %v2486
      %v2603 = vpack.c.b16 %v2489, %v2487
      %v2604 = vpack.c.b16 %v2492, %v2490
      %v2605 = vpack.c.b16 %v2493, %v2491
      %v2606 = vpack.c.b16 %v2496, %v2494
      %v2607 = vpack.c.b16 %v2497, %v2495
      %v2608 = vpack.c.b16 %v2500, %v2498
      %v2609 = vpack.c.b16 %v2501, %v2499
      %v2610 = vpack.c.b16 %v2504, %v2502
      %v2611 = vpack.c.b16 %v2505, %v2503
      %v2612 = vpack.c.b16 %v2508, %v2506
      %v2613 = vpack.c.b16 %v2509, %v2507
      %v2614 = vpack.c.b16 %v2512, %v2510
      %v2615 = vpack.c.b16 %v2513, %v2511
      %v2616 = vpack.c.b16 %v2516, %v2514
      %v2617 = vpack.c.b16 %v2517, %v2515
      %v2618 = vpack.c.b16 %v2520, %v2518
      %v2619 = vpack.c.b16 %v2521, %v2519
      %v2620 = vpack.c.b16 %v2524, %v2522
      %v2621 = vpack.c.b16 %v2525, %v2523
      %v2622 = vpack.c.b16 %v2528, %v2526
      %v2623 = vpack.c.b16 %v2529, %v2527
      %v2624 = vpack.c.b16 %v2532, %v2530
      %v2625 = vpack.c.b16 %v2533, %v2531
      %v2626 = vpack.c.b16 %v2536, %v2534
      %v2627 = vpack.c.b16 %v2537, %v2535
      %v2628 = vpack.c.b16 %v2540, %v2538
      %v2629 = vpack.c.b16 %v2541, %v2539
      %v2630 = vpack.c.b16 %v2544, %v2542
      %v2631 = vpack.c.b16 %v2545, %v2543
      %v2632 = vpack.c.b16 %v2548, %v2546
      %v2633 = vpack.c.b16 %v2549, %v2547
      %v2634 = vpack.c.b16 %v2552, %v2550
      %v2635 = vpack.c.b16 %v2553, %v2551
      %v2636 = vpack.c.b16 %v2556, %v2554
      %v2637 = vpack.c.b16 %v2557, %v2555
      %v2638 = vpack.c.b16 %v2560, %v2558
      %v2639 = vpack.c.b16 %v2561, %v2559
      %v2640 = vpack.c.b16 %v2564, %v2562
      %v2641 = vpack.c.b16 %v2565, %v2563
      %v2642 = vpack.c.b16 %v2568, %v2566
      %v2643 = vpack.c.b16 %v2569, %v2567
      %v2644 = vpack.c.b16 %v2572, %v2570
      %v2645 = vpack.c.b16 %v2573, %v2571
      %v2646 = vpack.c.b16 %v2576, %v2574
      %v2647 = vpack.c.b16 %v2577, %v2575
      %v2648 = vpack.c.b16 %v2580, %v2578
      %v2649 = vpack.c.b16 %v2581, %v2579
      %v2650 = vpack.c.b16 %v2584, %v2582
      %v2651 = vpack.c.b16 %v2585, %v2583
      %v2652 = vpack.c.b16 %v2588, %v2586
      %v2653 = vpack.c.b16 %v2589, %v2587
      %2718 = vmatpush.bf16.msra.mxu0 %v2604
      %2719 = vmatpush.bf16.msra.mxu0 %v2602
      %2720 = vmatpush.bf16.msra.mxu0 %v2600
      %2721 = vmatpush.bf16.msra.mxu0 %v2598
      %2722 = vmatpush.bf16.msra.mxu0 %v2596
      %2723 = vmatpush.bf16.msra.mxu0 %v2594
      %2724 = vmatpush.bf16.msra.mxu0 %v2592
      %2725 = vmatpush.bf16.msra.mxu0 %v2590
      %2726 = vmatmul.bf16.gmra.mxu0 %v2330
      %v2727 = vpop.f32.mrf.mxu0
      %v2728 = vadd.f32 0.0, %v2727
      %v2729 = vpop.f32.mrf.mxu0
      %2730 = vdwg.mxu0
      %2731 = vmatpush.bf16.msra.mxu0 %v2620
      %2732 = vmatpush.bf16.msra.mxu0 %v2618
      %2733 = vmatpush.bf16.msra.mxu0 %v2616
      %2734 = vmatpush.bf16.msra.mxu0 %v2614
      %2735 = vmatpush.bf16.msra.mxu0 %v2612
      %2736 = vmatpush.bf16.msra.mxu0 %v2610
      %2737 = vmatpush.bf16.msra.mxu0 %v2608
      %2738 = vmatpush.bf16.msra.mxu0 %v2606
      %2739 = vmatmul.bf16.gmra.mxu0 %v2331
      %v2740 = vpop.f32.mrf.mxu0
      %v2741 = vadd.f32 %v2728, %v2740
      %v2742 = vpop.f32.mrf.mxu0
      %2743 = vdwg.mxu0
      %2744 = vmatpush.bf16.msra.mxu0 %v2636
      %2745 = vmatpush.bf16.msra.mxu0 %v2634
      %2746 = vmatpush.bf16.msra.mxu0 %v2632
      %2747 = vmatpush.bf16.msra.mxu0 %v2630
      %2748 = vmatpush.bf16.msra.mxu0 %v2628
      %2749 = vmatpush.bf16.msra.mxu0 %v2626
      %2750 = vmatpush.bf16.msra.mxu0 %v2624
      %2751 = vmatpush.bf16.msra.mxu0 %v2622
      %2752 = vmatmul.bf16.gmra.mxu0 %v2332
      %v2753 = vpop.f32.mrf.mxu0
      %v2754 = vadd.f32 %v2741, %v2753
      %v2755 = vpop.f32.mrf.mxu0
      %2756 = vdwg.mxu0
      %2757 = vmatpush.bf16.msra.mxu0 %v2652
      %2758 = vmatpush.bf16.msra.mxu0 %v2650
      %2759 = vmatpush.bf16.msra.mxu0 %v2648
      %2760 = vmatpush.bf16.msra.mxu0 %v2646
      %2761 = vmatpush.bf16.msra.mxu0 %v2644
      %2762 = vmatpush.bf16.msra.mxu0 %v2642
      %2763 = vmatpush.bf16.msra.mxu0 %v2640
      %2764 = vmatpush.bf16.msra.mxu0 %v2638
      %2765 = vmatmul.bf16.gmra.mxu0 %v2333
      %v2766 = vpop.f32.mrf.mxu0
      %v2767 = vadd.f32 %v2754, %v2766
      %v2768 = vpop.f32.mrf.mxu0
      %2769 = vdwg.mxu0
      %2770 = vmatpush.bf16.msra.mxu0 %v2605
      %2771 = vmatpush.bf16.msra.mxu0 %v2603
      %2772 = vmatpush.bf16.msra.mxu0 %v2601
      %2773 = vmatpush.bf16.msra.mxu0 %v2599
      %2774 = vmatpush.bf16.msra.mxu0 %v2597
      %2775 = vmatpush.bf16.msra.mxu0 %v2595
      %2776 = vmatpush.bf16.msra.mxu0 %v2593
      %2777 = vmatpush.bf16.msra.mxu0 %v2591
      %2778 = vmatmul.bf16.gmra.mxu0 %v2330
      %v2779 = vpop.f32.mrf.mxu0
      %v2780 = vadd.f32 0.0, %v2779
      %v2781 = vpop.f32.mrf.mxu0
      %2782 = vdwg.mxu0
      %2783 = vmatpush.bf16.msra.mxu0 %v2621
      %2784 = vmatpush.bf16.msra.mxu0 %v2619
      %2785 = vmatpush.bf16.msra.mxu0 %v2617
      %2786 = vmatpush.bf16.msra.mxu0 %v2615
      %2787 = vmatpush.bf16.msra.mxu0 %v2613
      %2788 = vmatpush.bf16.msra.mxu0 %v2611
      %2789 = vmatpush.bf16.msra.mxu0 %v2609
      %2790 = vmatpush.bf16.msra.mxu0 %v2607
      %2791 = vmatmul.bf16.gmra.mxu0 %v2331
      %v2792 = vpop.f32.mrf.mxu0
      %v2793 = vadd.f32 %v2780, %v2792
      %v2794 = vpop.f32.mrf.mxu0
      %2795 = vdwg.mxu0
      %2796 = vmatpush.bf16.msra.mxu0 %v2637
      %2797 = vmatpush.bf16.msra.mxu0 %v2635
      %2798 = vmatpush.bf16.msra.mxu0 %v2633
      %2799 = vmatpush.bf16.msra.mxu0 %v2631
      %2800 = vmatpush.bf16.msra.mxu0 %v2629
      %2801 = vmatpush.bf16.msra.mxu0 %v2627
      %2802 = vmatpush.bf16.msra.mxu0 %v2625
      %2803 = vmatpush.bf16.msra.mxu0 %v2623
      %2804 = vmatmul.bf16.gmra.mxu0 %v2332
      %v2805 = vpop.f32.mrf.mxu0
      %v2806 = vadd.f32 %v2793, %v2805
      %v2807 = vpop.f32.mrf.mxu0
      %2808 = vdwg.mxu0
      %2809 = vmatpush.bf16.msra.mxu0 %v2653
      %2810 = vmatpush.bf16.msra.mxu0 %v2651
      %2811 = vmatpush.bf16.msra.mxu0 %v2649
      %2812 = vmatpush.bf16.msra.mxu0 %v2647
      %2813 = vmatpush.bf16.msra.mxu0 %v2645
      %2814 = vmatpush.bf16.msra.mxu0 %v2643
      %2815 = vmatpush.bf16.msra.mxu0 %v2641
      %2816 = vmatpush.bf16.msra.mxu0 %v2639
      %2817 = vmatmul.bf16.gmra.mxu0 %v2333
      %v2818 = vpop.f32.mrf.mxu0
      %v2819 = vadd.f32 %v2806, %v2818
      %v2820 = vpop.f32.mrf.mxu0
      %2821 = vdwg.mxu0
      %v2822 = vld [vmem:[#allocation5] sm:$0xf]
      %v2823 = vrot.slane %v2767, 4
      %v2824 = vadd.f32 %v2767, %v2823
      %v2825 = vrot.slane %v2824, 2
      %v2826 = vadd.f32 %v2824, %v2825
      %v2827 = vrot.slane %v2826, 1
      %v2828 = vadd.f32 %v2826, %v2827
      %v2829 = vrot.slane %v2819, 4
      %v2830 = vadd.f32 %v2819, %v2829
      %v2831 = vrot.slane %v2830, 2
      %v2832 = vadd.f32 %v2830, %v2831
      %v2833 = vrot.slane %v2832, 1
      %v2834 = vadd.f32 %v2832, %v2833
      %v2835 = vmul.f32 %v2828, %v2184
      %v2836 = vmul.f32 %v2834, %v2184
      %v2837 = vsub.f32 %v2767, %v2835
      %v2838 = vsub.f32 %v2819, %v2836
      %v2839 = vmul.f32 %v2837, %v2837
      %v2840 = vmul.f32 %v2838, %v2838
      %v2841 = vrot.slane %v2839, 4
      %v2842 = vadd.f32 %v2839, %v2841
      %v2843 = vrot.slane %v2842, 2
      %v2844 = vadd.f32 %v2842, %v2843
      %v2845 = vrot.slane %v2844, 1
      %v2846 = vadd.f32 %v2844, %v2845
      %v2847 = vrot.slane %v2840, 4
      %v2848 = vadd.f32 %v2840, %v2847
      %v2849 = vrot.slane %v2848, 2
      %v2850 = vadd.f32 %v2848, %v2849
      %v2851 = vrot.slane %v2850, 1
      %v2852 = vadd.f32 %v2850, %v2851
      %v2853 = vmul.f32 %v2846, %v2184
      %v2854 = vmul.f32 %v2852, %v2184
      %v2855 = vadd.f32 %v2853, 1e-05
      %v2856 = vadd.f32 %v2854, 1e-05
      %v2857 = vrsqrt.pop %v2855
      %v2858 = vmul.f32 %v2857, %v2855
      %v2859 = vmul.f32 %v2858, %v2857
      %v2860 = vmul.f32 0.5, %v2859
      %v2861 = vsub.f32 1.5, %v2860
      %v2862 = vmul.f32 %v2857, %v2861
      %vm2863 = vweird.f32 %v2855
      %vm2864 = vweird.f32 %v2857
      %vm2865 = vmor %vm2863, %vm2864
      %v2866 = vsel %vm2865, %v2857, %v2862
      %v2867 = vrsqrt.pop %v2856
      %v2868 = vmul.f32 %v2867, %v2856
      %v2869 = vmul.f32 %v2868, %v2867
      %v2870 = vmul.f32 0.5, %v2869
      %v2871 = vsub.f32 1.5, %v2870
      %v2872 = vmul.f32 %v2867, %v2871
      %vm2873 = vweird.f32 %v2856
      %vm2874 = vweird.f32 %v2867
      %vm2875 = vmor %vm2873, %vm2874
      %v2876 = vsel %vm2875, %v2867, %v2872
      %v2879 = vrot.slane %v2876, 6
      %v2880 = vsel %vm2276, %v2866, %v2879
      %v2882 = vmul.f32 %v2822, %v2880
      %v2884 = vperm.slane %v2882, 0
      %v2885 = vperm.slane %v2882, 2
      %v2888 = vperm.slane %v2884, 0
      %v2889 = vperm.slane %v2885, 0
      %v2890 = vmul.f32 %v2837, %v2888
      %v2891 = vmul.f32 %v2838, %v2889
      %v2893 = vperm.slane %v2822, 1
      %v2894 = vperm.slane %v2822, 3
      %v2897 = vperm.slane %v2893, 1
      %v2898 = vperm.slane %v2894, 1
      %v2899 = vadd.f32 %v2890, %v2897
      %v2900 = vadd.f32 %v2891, %v2898
      %vm2901 = vcmp.gt.f32.partialorder %v2899, 0.0
      %vm2902 = vcmp.gt.f32.partialorder %v2900, 0.0
      %v2903 = vmul.f32 %v2899, 0.1
      %v2904 = vmul.f32 %v2900, 0.1
      %v2905 = vsel %vm2901, %v2899, %v2903
      %v2906 = vsel %vm2902, %v2900, %v2904
      %v2907 = vld [vmem:[#allocation6] sm:$0xff]
      %v2908 = vld [vmem:[#allocation6 + $0x8] sm:$0xff]
      %v2909 = vld [vmem:[#allocation6 + $0x10] sm:$0xff]
      %v2910 = vld [vmem:[#allocation6 + $0x18] sm:$0xff]
      %v2911 = vld [vmem:[#allocation6 + $0x20] sm:$0xff]
      %v2912 = vld [vmem:[#allocation6 + $0x28] sm:$0xff]
      %v2913 = vld [vmem:[#allocation6 + $0x30] sm:$0xff]
      %v2914 = vld [vmem:[#allocation6 + $0x38] sm:$0xff]
      %v2915 = vld [vmem:[#allocation6 + $0x40] sm:$0xff]
      %v2916 = vld [vmem:[#allocation6 + $0x48] sm:$0xff]
      %v2917 = vld [vmem:[#allocation6 + $0x50] sm:$0xff]
      %v2918 = vld [vmem:[#allocation6 + $0x58] sm:$0xff]
      %v2919 = vld [vmem:[#allocation6 + $0x60] sm:$0xff]
      %v2920 = vld [vmem:[#allocation6 + $0x68] sm:$0xff]
      %v2921 = vld [vmem:[#allocation6 + $0x70] sm:$0xff]
      %v2922 = vld [vmem:[#allocation6 + $0x78] sm:$0xff]
      %v2923 = vld [vmem:[#allocation6 + $0x80] sm:$0xff]
      %v2924 = vld [vmem:[#allocation6 + $0x88] sm:$0xff]
      %v2925 = vld [vmem:[#allocation6 + $0x90] sm:$0xff]
      %v2926 = vld [vmem:[#allocation6 + $0x98] sm:$0xff]
      %v2927 = vld [vmem:[#allocation6 + $0xa0] sm:$0xff]
      %v2928 = vld [vmem:[#allocation6 + $0xa8] sm:$0xff]
      %v2929 = vld [vmem:[#allocation6 + $0xb0] sm:$0xff]
      %v2930 = vld [vmem:[#allocation6 + $0xb8] sm:$0xff]
      %v2931 = vld [vmem:[#allocation6 + $0xc0] sm:$0xff]
      %v2932 = vld [vmem:[#allocation6 + $0xc8] sm:$0xff]
      %v2933 = vld [vmem:[#allocation6 + $0xd0] sm:$0xff]
      %v2934 = vld [vmem:[#allocation6 + $0xd8] sm:$0xff]
      %v2935 = vld [vmem:[#allocation6 + $0xe0] sm:$0xff]
      %v2936 = vld [vmem:[#allocation6 + $0xe8] sm:$0xff]
      %v2937 = vld [vmem:[#allocation6 + $0xf0] sm:$0xff]
      %v2938 = vld [vmem:[#allocation6 + $0xf8] sm:$0xff]
      %v2939 = vld [vmem:[#allocation7] sm:$0x1]
      %v2941 = vperm.slane %v2939, 0
      %2943 = vmatpush.msra.mxu0 %v2922
      %2944 = vmatpush.msra.mxu0 %v2921
      %2945 = vmatpush.msra.mxu0 %v2920
      %2946 = vmatpush.msra.mxu0 %v2919
      %2947 = vmatpush.msra.mxu0 %v2918
      %2948 = vmatpush.msra.mxu0 %v2917
      %2949 = vmatpush.msra.mxu0 %v2916
      %2950 = vmatpush.msra.mxu0 %v2915
      %2951 = vmatpush.msra.mxu0 %v2914
      %2952 = vmatpush.msra.mxu0 %v2913
      %2953 = vmatpush.msra.mxu0 %v2912
      %2954 = vmatpush.msra.mxu0 %v2911
      %2955 = vmatpush.msra.mxu0 %v2910
      %2956 = vmatpush.msra.mxu0 %v2909
      %2957 = vmatpush.msra.mxu0 %v2908
      %2958 = vmatpush.msra.mxu0 %v2907
      %2959 = vmatmul.f32.gmra.mxu0 %v2905
      %v2960 = vpop.f32.mrf.mxu0
      %v2961 = vadd.f32 %v2941, %v2960
      %2962 = vdwg.mxu0
      %2963 = vmatpush.msra.mxu0 %v2938
      %2964 = vmatpush.msra.mxu0 %v2937
      %2965 = vmatpush.msra.mxu0 %v2936
      %2966 = vmatpush.msra.mxu0 %v2935
      %2967 = vmatpush.msra.mxu0 %v2934
      %2968 = vmatpush.msra.mxu0 %v2933
      %2969 = vmatpush.msra.mxu0 %v2932
      %2970 = vmatpush.msra.mxu0 %v2931
      %2971 = vmatpush.msra.mxu0 %v2930
      %2972 = vmatpush.msra.mxu0 %v2929
      %2973 = vmatpush.msra.mxu0 %v2928
      %2974 = vmatpush.msra.mxu0 %v2927
      %2975 = vmatpush.msra.mxu0 %v2926
      %2976 = vmatpush.msra.mxu0 %v2925
      %2977 = vmatpush.msra.mxu0 %v2924
      %2978 = vmatpush.msra.mxu0 %v2923
      %2979 = vmatmul.f32.gmra.mxu0 %v2906
      %v2980 = vpop.f32.mrf.mxu0
      %v2981 = vadd.f32 %v2961, %v2980
      %2982 = vdwg.mxu0
      %v2983 = vlaneseq
      %v2984 = vand.u32 %v2983, 127
      %vm2985 = vcmp.ge.s32.totalorder %v2984, 4
      %v2986 = vmul.f32 %v2981, 1.442695
      %v2987 = vpow.pop %v2986
      %v2988 = vsel %vm2985, %v2987, %v2981
      %2989 = vst [vmem:[#allocation14] sm:$0xff] %v2988
    $region71: #{tpu_custom_call.1} parent=1 // pred_fallthru
      _
    // Predicated region
    $region72: #{tpu_custom_call.1} parent=1 // pred_check
      _
    $region73: #{tpu_custom_call.1} parent=1 // pred_check_branch
      %2991 = sbr.rel (0) target = $region75
    $region74: #{tpu_custom_call.1} parent=1 // pred_region
      %2993 = vsyncadd [#allocation11], 0
      %s2995 = sshll.u32 [#allocation14], 4
      %s2996 = int_to_ptr.vmem [resolvable:$true] %s2995
      %s2997 = sshll.u32 %s7, 4
      %s2998 = int_to_ptr.hbm [resolvable:$true] %s2997
      %3000 = dma.vmem_to_hbm [thread:$0]  %s2996, 128, %s2998, [#allocation11]
    $region75: #{tpu_custom_call.1} parent=1 // pred_fallthru
      _
    // Predicated region
    $region76: #{tpu_custom_call.1} parent=1 // pred_check
      _
    $region77: #{tpu_custom_call.1} parent=1 // pred_check_branch
      %3002 = sbr.rel (0) target = $region79
    $region78: #{tpu_custom_call.1} parent=1 // pred_region
      %3004 = dma.done [#allocation11], 128
    $region79: #{tpu_custom_call.1} parent=1 // pred_fallthru
      _
    %3005 = vsyncpa [#allocation10], 1
    %3006 = vsyncpa [#allocation13], 1
    %3007 = vsyncpa [#allocation11], 1
  %3008 = vsyncmov [#allocation8]
  %s3009 = vpop.sfrf %3008
  %p3010 = scmp.eq.s32.totalorder %s3009, 0
  %p3011 = pneg %p3010
  %3013 = shalt.err (%p3011)
  %s3014 = scalar_lea.sflag [#allocation8], 1
  %3015 = vsyncmov %s3014
  %s3016 = vpop.sfrf %3015
  %p3017 = scmp.eq.s32.totalorder %s3016, 0
  %p3018 = pneg %p3017
  %3020 = shalt.err (%p3018)
  %s3021 = scalar_lea.sflag [#allocation8], 2
  %3022 = vsyncmov %s3021
  %s3023 = vpop.sfrf %3022
  %p3024 = scmp.eq.s32.totalorder %s3023, 0
  %p3025 = pneg %p3024
  %3027 = shalt.err (%p3025)
  %s3028 = scalar_lea.sflag [#allocation8], 3
  %3029 = vsyncmov %s3028
  %s3030 = vpop.sfrf %3029
  %p3031 = scmp.eq.s32.totalorder %s3030, 0
  %p3032 = pneg %p3031
  %3034 = shalt.err (%p3032)
  %s3035 = scalar_lea.sflag [#allocation8], 4
  %3036 = vsyncmov %s3035
  %s3037 = vpop.sfrf %3036
  %p3038 = scmp.eq.s32.totalorder %s3037, 0
  %p3039 = pneg %p3038
  %3041 = shalt.err (%p3039)

</llo_original>
